<compile_context>
chip_gen: v7x
topology: tpu7x:2x2x1
jax: 0.10.0
libtpu: 0.0.40
codegen_flags: <defaults>
</compile_context>

<pallas_src>
import jax
import jax.numpy as jnp
from jax import lax
from jax.experimental import pallas as pl
from jax.experimental.pallas import tpu as pltpu


def _make_kernel(temperature, use_bf16_mxu):
    inv_t = float(1.0 / temperature)

    def kernel(q_ref, kq_ref, k_ref, o_ref):
        # q_ref : (TB, D, TQ)  queries of this (batch, query) tile
        # kq_ref: (TB, D, TQ)  keys at the SAME patch indices (for l_pos)
        # k_ref : (TB, D, N)   all keys of this batch tile (negatives)
        # o_ref : (TB, 1, TQ)  per-row cross-entropy loss
        eps = jnp.float32(1e-12)
        tb = q_ref.shape[0]

        for bi in range(tb):  # static, small unroll (TB <= 8)
            q = q_ref[bi].astype(jnp.float32)    # (D, TQ)
            kq = kq_ref[bi].astype(jnp.float32)  # (D, TQ)
            k = k_ref[bi].astype(jnp.float32)    # (D, N)

            # F.normalize(p=1, dim=-1): x / max(sum|x|, eps).  Reciprocal on
            # the (1, .) sums + broadcast multiply instead of dividing the
            # full (D, .) tensors; fold 1/temperature into q so it never
            # touches the (N, TQ) logits.
            inv_q = pl.reciprocal(
                jnp.maximum(jnp.sum(jnp.abs(q), axis=0, keepdims=True), eps))
            inv_kq = pl.reciprocal(
                jnp.maximum(jnp.sum(jnp.abs(kq), axis=0, keepdims=True), eps))
            inv_k = pl.reciprocal(
                jnp.maximum(jnp.sum(jnp.abs(k), axis=0, keepdims=True), eps))
            qn = q * (inv_q * jnp.float32(inv_t))   # (D, TQ), includes 1/T
            kqn = kq * inv_kq                        # (D, TQ)
            kn = k * inv_k                           # (D, N)

            # Positive logit per query: l_pos[i] = (q_i . k_i) / T   (1, TQ)
            l_pos = jnp.sum(qn * kqn, axis=0, keepdims=True)

            # Similarity tile on the MXU: s[j, i] = (k_j . q_i) / T  (N, TQ).
            # No diagonal masking needed: the diagonal entry equals l_pos, so
            # logsumexp over the unmasked row == logsumexp([l_pos, off-diag]).
            lhs, rhs = kn, qn
            if use_bf16_mxu:
                lhs = lhs.astype(jnp.bfloat16)
                rhs = rhs.astype(jnp.bfloat16)
            s = lax.dot_general(
                lhs, rhs,
                dimension_numbers=(((0,), (0,)), ((), ())),
                preferred_element_type=jnp.float32,
            )

            m = jnp.max(s, axis=0, keepdims=True)                     # (1, TQ)
            lse = m + jnp.log(
                jnp.sum(jnp.exp(s - m), axis=0, keepdims=True))       # (1, TQ)
            o_ref[bi] = lse - l_pos                                   # (1, TQ)

    return kernel


def _choose_tiles(b, d, n, itemsize):
    """Pick (batch_tile, query_tile) so the (N, TQ) logits tile and the
    double-buffered inputs fit comfortably in VMEM on v5e/v6e/v7x."""
    # Query tile: keep the f32 (N, TQ) logits tile <= ~8 MiB.  Only tile when
    # N is a multiple of 128 (otherwise the full dim is the only legal block).
    tq = n
    if n % 128 == 0:
        while tq % 256 == 0 and n * tq * 4 > 8 * 1024 * 1024:
            tq //= 2
    # Batch tile: amortize per-grid-step overhead when N*D is small, while
    # keeping the per-step VMEM footprint <= ~24 MiB.
    per_elem = 3 * n * tq * 4 + 4 * d * tq * itemsize + 2 * d * n * itemsize
    tb = 1
    for cand in (8, 4, 2):
        if b % cand == 0 and cand * per_elem <= 24 * 1024 * 1024:
            tb = cand
            break
    return tb, tq


def con_loss(feat_q, feat_k, temperature=0.07, base_temperature=0.07):
    """ConLoss.forward.  feat_q / feat_k: (B, C, H, W).

    Note: like the PyTorch module, `base_temperature` is accepted for API
    parity but never used by the forward pass.
    """
    assert feat_q.shape == feat_k.shape, (feat_q.shape, feat_k.shape)
    b, d = int(feat_q.shape[0]), int(feat_q.shape[1])
    n = 1
    for s in feat_q.shape[2:]:
        n *= int(s)

    # (B, C, H, W) -> (B, D, N): pure reshape, no transpose, no dtype cast.
    # Features live on sublanes, patches on lanes (lane-dense for N % 128 == 0).
    q = feat_q.reshape(b, d, n)
    k = feat_k.reshape(b, d, n)
    itemsize = q.dtype.itemsize

    tb, tq = _choose_tiles(b, d, n, itemsize)
    grid = (b // tb, n // tq)

    out = pl.pallas_call(
        _make_kernel(temperature, use_bf16_mxu=(d >= 128)),
        out_shape=jax.ShapeDtypeStruct((b, 1, n), jnp.float32),
        grid_spec=pltpu.PrefetchScalarGridSpec(
            num_scalar_prefetch=0,
            grid=grid,
            in_specs=[
                # queries of this (batch, query) tile
                pl.BlockSpec((tb, d, tq), lambda i, t: (i, 0, t)),
                # keys at the same patch indices (for l_pos)
                pl.BlockSpec((tb, d, tq), lambda i, t: (i, 0, t)),
                # all keys of this batch tile (negatives); resident across t
                pl.BlockSpec((tb, d, n), lambda i, t: (i, 0, 0)),
            ],
            out_specs=pl.BlockSpec((tb, 1, tq), lambda i, t: (i, 0, t)),
        ),
        compiler_params=pltpu.CompilerParams(
            dimension_semantics=("parallel", "parallel"),
            vmem_limit_bytes=48 * 1024 * 1024,
        ),
        cost_estimate=pl.CostEstimate(
            flops=2 * b * n * n * d + 8 * b * n * d,
            transcendentals=b * n * n + 4 * b * n,
            bytes_accessed=3 * b * d * n * itemsize + b * n * 4,
        ),
    )(q, k, k)

    # Cross-entropy with target class 0, mean over all B*N rows.
    return jnp.mean(out)


def _reference(feat_q, feat_k, temperature=0.07):
    """Pure-JAX reference mirroring the PyTorch forward."""
    b, d = feat_q.shape[0], feat_q.shape[1]
    q = feat_q.reshape(b, d, -1).transpose(0, 2, 1)
    k = feat_k.reshape(b, d, -1).transpose(0, 2, 1)
    q = q / jnp.maximum(jnp.sum(jnp.abs(q), -1, keepdims=True), 1e-12)
    k = k / jnp.maximum(jnp.sum(jnp.abs(k), -1, keepdims=True), 1e-12)
    l_pos = jnp.sum(q * k, -1).reshape(-1, 1)
    l_neg = jnp.einsum("bnd,bmd->bnm", q, k)
    n = l_neg.shape[1]
    eye = jnp.eye(n, dtype=bool)[None]
    l_neg = jnp.where(eye, -jnp.inf, l_neg).reshape(-1, n)
    out = jnp.concatenate([l_pos, l_neg], axis=1) / temperature
    lse = jax.scipy.special.logsumexp(out, axis=1)
    return jnp.mean(lse - out[:, 0])


if __name__ == "__main__":
    key = jax.random.PRNGKey(0)
    kq, kk = jax.random.split(key)
    # Small shapes consistent with the module: B=2, C(dim)=4, H=W=16 -> N=256.
    feat_q = jax.random.normal(kq, (2, 4, 16, 16), dtype=jnp.float32)
    feat_k = jax.random.normal(kk, (2, 4, 16, 16), dtype=jnp.float32)

    loss = jax.block_until_ready(con_loss(feat_q, feat_k))
    ref = jax.block_until_ready(_reference(feat_q, feat_k))

    assert jnp.isfinite(loss), loss
    assert jnp.allclose(loss, ref, rtol=1e-5, atol=1e-5), (loss, ref)
    print("KERNEL_OK")
</pallas_src>

<mosaic_0001>
module attributes {stable_mosaic.version = 11 : i64} {
  func.func @kernel(%arg0: i32, %arg1: i32, %arg2: memref<2x4x256xf32, #tpu.memory_space<vmem>>, %arg3: memref<2x4x256xf32, #tpu.memory_space<vmem>>, %arg4: memref<2x4x256xf32, #tpu.memory_space<vmem>>, %arg5: memref<2x1x256xf32, #tpu.memory_space<vmem>>) attributes {dimension_semantics = [#tpu.dimension_semantics<parallel>, #tpu.dimension_semantics<parallel>], iteration_bounds = array<i64: 1, 1>, scalar_prefetch = 0 : i64, scratch_operands = 0 : i64, tpu.core_type = #tpu.core_type<tc>, window_params = [{transform_indices = @transform_0, window_bounds = array<i64: 2, 4, 256>}, {transform_indices = @transform_1, window_bounds = array<i64: 2, 4, 256>}, {transform_indices = @transform_2, window_bounds = array<i64: 2, 4, 256>}, {transform_indices = @transform_3, window_bounds = array<i64: 2, 1, 256>}]} {
    %c0 = arith.constant 0 : index
    %c0_0 = arith.constant 0 : index
    %c0_1 = arith.constant 0 : index
    %0 = vector.load %arg2[%c0, %c0_0, %c0_1] : memref<2x4x256xf32, #tpu.memory_space<vmem>>, vector<1x4x256xf32>
    %1 = vector.shape_cast %0 : vector<1x4x256xf32> to vector<4x256xf32>
    %c0_2 = arith.constant 0 : index
    %c0_3 = arith.constant 0 : index
    %c0_4 = arith.constant 0 : index
    %2 = vector.load %arg3[%c0_2, %c0_3, %c0_4] : memref<2x4x256xf32, #tpu.memory_space<vmem>>, vector<1x4x256xf32>
    %3 = vector.shape_cast %2 : vector<1x4x256xf32> to vector<4x256xf32>
    %c0_5 = arith.constant 0 : index
    %c0_6 = arith.constant 0 : index
    %c0_7 = arith.constant 0 : index
    %4 = vector.load %arg4[%c0_5, %c0_6, %c0_7] : memref<2x4x256xf32, #tpu.memory_space<vmem>>, vector<1x4x256xf32>
    %5 = vector.shape_cast %4 : vector<1x4x256xf32> to vector<4x256xf32>
    %6 = math.absf %1 : vector<4x256xf32>
    %cst = arith.constant dense<0.000000e+00> : vector<256xf32>
    %7 = vector.multi_reduction <add>, %6, %cst [0] : vector<4x256xf32> to vector<256xf32>
    %8 = vector.shape_cast %7 : vector<256xf32> to vector<1x256xf32>
    %cst_8 = arith.constant 9.99999996E-13 : f32
    %9 = vector.broadcast %cst_8 : f32 to vector<1x256xf32>
    %10 = arith.maximumf %8, %9 : vector<1x256xf32>
    %11 = tpu.reciprocal %10 : vector<1x256xf32> -> vector<1x256xf32>
    %12 = math.absf %3 : vector<4x256xf32>
    %cst_9 = arith.constant dense<0.000000e+00> : vector<256xf32>
    %13 = vector.multi_reduction <add>, %12, %cst_9 [0] : vector<4x256xf32> to vector<256xf32>
    %14 = vector.shape_cast %13 : vector<256xf32> to vector<1x256xf32>
    %cst_10 = arith.constant 9.99999996E-13 : f32
    %15 = vector.broadcast %cst_10 : f32 to vector<1x256xf32>
    %16 = arith.maximumf %14, %15 : vector<1x256xf32>
    %17 = tpu.reciprocal %16 : vector<1x256xf32> -> vector<1x256xf32>
    %18 = math.absf %5 : vector<4x256xf32>
    %cst_11 = arith.constant dense<0.000000e+00> : vector<256xf32>
    %19 = vector.multi_reduction <add>, %18, %cst_11 [0] : vector<4x256xf32> to vector<256xf32>
    %20 = vector.shape_cast %19 : vector<256xf32> to vector<1x256xf32>
    %cst_12 = arith.constant 9.99999996E-13 : f32
    %21 = vector.broadcast %cst_12 : f32 to vector<1x256xf32>
    %22 = arith.maximumf %20, %21 : vector<1x256xf32>
    %23 = tpu.reciprocal %22 : vector<1x256xf32> -> vector<1x256xf32>
    %cst_13 = arith.constant 14.2857141 : f32
    %24 = vector.broadcast %cst_13 : f32 to vector<1x256xf32>
    %25 = arith.mulf %11, %24 : vector<1x256xf32>
    %26 = vector.broadcast %25 : vector<1x256xf32> to vector<4x256xf32>
    %27 = arith.mulf %1, %26 : vector<4x256xf32>
    %28 = vector.broadcast %17 : vector<1x256xf32> to vector<4x256xf32>
    %29 = arith.mulf %3, %28 : vector<4x256xf32>
    %30 = vector.broadcast %23 : vector<1x256xf32> to vector<4x256xf32>
    %31 = arith.mulf %5, %30 : vector<4x256xf32>
    %32 = arith.mulf %27, %29 : vector<4x256xf32>
    %cst_14 = arith.constant dense<0.000000e+00> : vector<256xf32>
    %33 = vector.multi_reduction <add>, %32, %cst_14 [0] : vector<4x256xf32> to vector<256xf32>
    %34 = vector.shape_cast %33 : vector<256xf32> to vector<1x256xf32>
    %cst_15 = arith.constant dense<0.000000e+00> : vector<256x256xf32>
    %35 = tpu.matmul %31, %27, %cst_15 {dimension_numbers = #tpu.dot_dimension_numbers<[0], [0], [1], [1], [0, 1, 1, 1], [], []>} : vector<4x256xf32>, vector<4x256xf32>, vector<256x256xf32> -> vector<256x256xf32>
    %cst_16 = arith.constant dense<0xFF800000> : vector<256xf32>
    %36 = vector.multi_reduction <maximumf>, %35, %cst_16 [0] : vector<256x256xf32> to vector<256xf32>
    %37 = vector.shape_cast %36 : vector<256xf32> to vector<1x256xf32>
    %38 = vector.broadcast %37 : vector<1x256xf32> to vector<256x256xf32>
    %39 = arith.subf %35, %38 : vector<256x256xf32>
    %40 = math.exp %39 : vector<256x256xf32>
    %cst_17 = arith.constant dense<0.000000e+00> : vector<256xf32>
    %41 = vector.multi_reduction <add>, %40, %cst_17 [0] : vector<256x256xf32> to vector<256xf32>
    %42 = vector.shape_cast %41 : vector<256xf32> to vector<1x256xf32>
    %43 = math.log %42 : vector<1x256xf32>
    %44 = arith.addf %37, %43 : vector<1x256xf32>
    %45 = arith.subf %44, %34 : vector<1x256xf32>
    %c0_18 = arith.constant 0 : index
    %c0_19 = arith.constant 0 : index
    %c0_20 = arith.constant 0 : index
    %46 = vector.load %arg5[%c0_18, %c0_19, %c0_20] : memref<2x1x256xf32, #tpu.memory_space<vmem>>, vector<1x1x256xf32>
    %47 = vector.shape_cast %46 : vector<1x1x256xf32> to vector<1x256xf32>
    %48 = vector.shape_cast %45 : vector<1x256xf32> to vector<1x1x256xf32>
    tpu.vector_store %arg5[%c0_18, %c0_19, %c0_20], %48 {strides = array<i32>} : memref<2x1x256xf32, #tpu.memory_space<vmem>>, vector<1x1x256xf32>,
    %c1 = arith.constant 1 : index
    %c0_21 = arith.constant 0 : index
    %c0_22 = arith.constant 0 : index
    %49 = vector.load %arg2[%c1, %c0_21, %c0_22] : memref<2x4x256xf32, #tpu.memory_space<vmem>>, vector<1x4x256xf32>
    %50 = vector.shape_cast %49 : vector<1x4x256xf32> to vector<4x256xf32>
    %c1_23 = arith.constant 1 : index
    %c0_24 = arith.constant 0 : index
    %c0_25 = arith.constant 0 : index
    %51 = vector.load %arg3[%c1_23, %c0_24, %c0_25] : memref<2x4x256xf32, #tpu.memory_space<vmem>>, vector<1x4x256xf32>
    %52 = vector.shape_cast %51 : vector<1x4x256xf32> to vector<4x256xf32>
    %c1_26 = arith.constant 1 : index
    %c0_27 = arith.constant 0 : index
    %c0_28 = arith.constant 0 : index
    %53 = vector.load %arg4[%c1_26, %c0_27, %c0_28] : memref<2x4x256xf32, #tpu.memory_space<vmem>>, vector<1x4x256xf32>
    %54 = vector.shape_cast %53 : vector<1x4x256xf32> to vector<4x256xf32>
    %55 = math.absf %50 : vector<4x256xf32>
    %cst_29 = arith.constant dense<0.000000e+00> : vector<256xf32>
    %56 = vector.multi_reduction <add>, %55, %cst_29 [0] : vector<4x256xf32> to vector<256xf32>
    %57 = vector.shape_cast %56 : vector<256xf32> to vector<1x256xf32>
    %cst_30 = arith.constant 9.99999996E-13 : f32
    %58 = vector.broadcast %cst_30 : f32 to vector<1x256xf32>
    %59 = arith.maximumf %57, %58 : vector<1x256xf32>
    %60 = tpu.reciprocal %59 : vector<1x256xf32> -> vector<1x256xf32>
    %61 = math.absf %52 : vector<4x256xf32>
    %cst_31 = arith.constant dense<0.000000e+00> : vector<256xf32>
    %62 = vector.multi_reduction <add>, %61, %cst_31 [0] : vector<4x256xf32> to vector<256xf32>
    %63 = vector.shape_cast %62 : vector<256xf32> to vector<1x256xf32>
    %cst_32 = arith.constant 9.99999996E-13 : f32
    %64 = vector.broadcast %cst_32 : f32 to vector<1x256xf32>
    %65 = arith.maximumf %63, %64 : vector<1x256xf32>
    %66 = tpu.reciprocal %65 : vector<1x256xf32> -> vector<1x256xf32>
    %67 = math.absf %54 : vector<4x256xf32>
    %cst_33 = arith.constant dense<0.000000e+00> : vector<256xf32>
    %68 = vector.multi_reduction <add>, %67, %cst_33 [0] : vector<4x256xf32> to vector<256xf32>
    %69 = vector.shape_cast %68 : vector<256xf32> to vector<1x256xf32>
    %cst_34 = arith.constant 9.99999996E-13 : f32
    %70 = vector.broadcast %cst_34 : f32 to vector<1x256xf32>
    %71 = arith.maximumf %69, %70 : vector<1x256xf32>
    %72 = tpu.reciprocal %71 : vector<1x256xf32> -> vector<1x256xf32>
    %cst_35 = arith.constant 14.2857141 : f32
    %73 = vector.broadcast %cst_35 : f32 to vector<1x256xf32>
    %74 = arith.mulf %60, %73 : vector<1x256xf32>
    %75 = vector.broadcast %74 : vector<1x256xf32> to vector<4x256xf32>
    %76 = arith.mulf %50, %75 : vector<4x256xf32>
    %77 = vector.broadcast %66 : vector<1x256xf32> to vector<4x256xf32>
    %78 = arith.mulf %52, %77 : vector<4x256xf32>
    %79 = vector.broadcast %72 : vector<1x256xf32> to vector<4x256xf32>
    %80 = arith.mulf %54, %79 : vector<4x256xf32>
    %81 = arith.mulf %76, %78 : vector<4x256xf32>
    %cst_36 = arith.constant dense<0.000000e+00> : vector<256xf32>
    %82 = vector.multi_reduction <add>, %81, %cst_36 [0] : vector<4x256xf32> to vector<256xf32>
    %83 = vector.shape_cast %82 : vector<256xf32> to vector<1x256xf32>
    %cst_37 = arith.constant dense<0.000000e+00> : vector<256x256xf32>
    %84 = tpu.matmul %80, %76, %cst_37 {dimension_numbers = #tpu.dot_dimension_numbers<[0], [0], [1], [1], [0, 1, 1, 1], [], []>} : vector<4x256xf32>, vector<4x256xf32>, vector<256x256xf32> -> vector<256x256xf32>
    %cst_38 = arith.constant dense<0xFF800000> : vector<256xf32>
    %85 = vector.multi_reduction <maximumf>, %84, %cst_38 [0] : vector<256x256xf32> to vector<256xf32>
    %86 = vector.shape_cast %85 : vector<256xf32> to vector<1x256xf32>
    %87 = vector.broadcast %86 : vector<1x256xf32> to vector<256x256xf32>
    %88 = arith.subf %84, %87 : vector<256x256xf32>
    %89 = math.exp %88 : vector<256x256xf32>
    %cst_39 = arith.constant dense<0.000000e+00> : vector<256xf32>
    %90 = vector.multi_reduction <add>, %89, %cst_39 [0] : vector<256x256xf32> to vector<256xf32>
    %91 = vector.shape_cast %90 : vector<256xf32> to vector<1x256xf32>
    %92 = math.log %91 : vector<1x256xf32>
    %93 = arith.addf %86, %92 : vector<1x256xf32>
    %94 = arith.subf %93, %83 : vector<1x256xf32>
    %c1_40 = arith.constant 1 : index
    %c0_41 = arith.constant 0 : index
    %c0_42 = arith.constant 0 : index
    %95 = vector.load %arg5[%c1_40, %c0_41, %c0_42] : memref<2x1x256xf32, #tpu.memory_space<vmem>>, vector<1x1x256xf32>
    %96 = vector.shape_cast %95 : vector<1x1x256xf32> to vector<1x256xf32>
    %97 = vector.shape_cast %94 : vector<1x256xf32> to vector<1x1x256xf32>
    tpu.vector_store %arg5[%c1_40, %c0_41, %c0_42], %97 {strides = array<i32>} : memref<2x1x256xf32, #tpu.memory_space<vmem>>, vector<1x1x256xf32>,
    return
  }
  func.func @transform_0(%arg0: i32, %arg1: i32) -> (i32, i32, i32) {
    %c0_i32 = arith.constant 0 : i32
    %c0_i32_0 = arith.constant 0 : i32
    return %arg0, %c0_i32, %arg1 : i32, i32, i32
  }
  func.func @transform_1(%arg0: i32, %arg1: i32) -> (i32, i32, i32) {
    %c0_i32 = arith.constant 0 : i32
    %c0_i32_0 = arith.constant 0 : i32
    return %arg0, %c0_i32, %arg1 : i32, i32, i32
  }
  func.func @transform_2(%arg0: i32, %arg1: i32) -> (i32, i32, i32) {
    %c0_i32 = arith.constant 0 : i32
    %c0_i32_0 = arith.constant 0 : i32
    %c0_i32_1 = arith.constant 0 : i32
    return %arg0, %c0_i32, %c0_i32_0 : i32, i32, i32
  }
  func.func @transform_3(%arg0: i32, %arg1: i32) -> (i32, i32, i32) {
    %c0_i32 = arith.constant 0 : i32
    %c0_i32_0 = arith.constant 0 : i32
    return %arg0, %c0_i32, %arg1 : i32, i32, i32
  }
}

</mosaic_0001>

<llo_original>
// kernel: tpu_custom_call.1
$region0: #{tpu_custom_call.1}
  #allocation0 [shape = 'u32[]', space=smem, size = 0x4, offset = 0x4, fixed_abs, tag = 'smem constant byte address 0x4 - core index']
  #allocation1 [shape = 'u32[144,128]{1,0:T(1,128)}', space=vmem, size = 0x12000, scoped, tag = 'internal scratch']
  %s0 = inlined_call_operand.hbm [shape: f32[2,4,256], index: 0, kind: input, shape index: {}]
  %s1 = inlined_call_operand.hbm [shape: f32[2,4,256], index: 1, kind: input, shape index: {}]
  %s2 = inlined_call_operand.hbm [shape: f32[2,4,256], index: 2, kind: input, shape index: {}]
  %s3 = inlined_call_operand.hbm [shape: f32[2,1,256], index: 3, kind: output, shape index: {}]
  %s4 = sld [smem:[#allocation0]]
  $region34: #{tpu_custom_call.1} parent=0
    _
  %s6 = ssub.s32 1, %s4
  %s7 = scalar_select 0, %s6, %s4
  $region1: #{tpu_custom_call.1} parent=0
    #allocation2 [shape = 'u8[8192]{0}', space=vmem, size = 0x2000, scoped, tag = 'input window, operand 0, single buffered']
    #allocation3 [shape = 's32[1]{0}', space=sflag, size = 0x4, scoped, tag = 'scoped memory for tpu_custom_call.1']
    #allocation4 [shape = 's32[1]{0}', space=sflag, size = 0x4, scoped, tag = 'scoped memory for tpu_custom_call.1']
    #allocation5 [shape = 'u8[8192]{0}', space=vmem, size = 0x2000, scoped, tag = 'input window, operand 1, single buffered']
    #allocation6 [shape = 's32[1]{0}', space=sflag, size = 0x4, scoped, tag = 'scoped memory for tpu_custom_call.1']
    #allocation7 [shape = 'u8[8192]{0}', space=vmem, size = 0x2000, scoped, tag = 'input window, operand 2, single buffered']
    #allocation8 [shape = 'u8[2048]{0}', space=vmem, size = 0x800, scoped, tag = 'output window, operand 0, single buffered']
    %8 = vsyncpa [#allocation3], 0
    %9 = vsyncpa [#allocation6], 0
    %10 = vsyncpa [#allocation4], 0
    // Predicated region
    $region2: #{tpu_custom_call.1} parent=1 // pred_check
      _
    $region3: #{tpu_custom_call.1} parent=1 // pred_check_branch
      %12 = sbr.rel (0) target = $region5
    $region4: #{tpu_custom_call.1} parent=1 // pred_region
      %s14 = ssub.s32 256, 256
      %15 = vsyncadd [#allocation3], %s14
      %s16 = sshll.u32 [#allocation2], 4
      %s17 = int_to_ptr.vmem [resolvable:$true] %s16
      %22 = dma.hbm_to_vmem [thread:$0]  %s0, 256, %s17, [#allocation3], 128, 128, 8
    $region5: #{tpu_custom_call.1} parent=1 // pred_fallthru
      _
    // Predicated region
    $region6: #{tpu_custom_call.1} parent=1 // pred_check
      _
    $region7: #{tpu_custom_call.1} parent=1 // pred_check_branch
      %24 = sbr.rel (0) target = $region9
    $region8: #{tpu_custom_call.1} parent=1 // pred_region
      %s26 = ssub.s32 256, 256
      %27 = vsyncadd [#allocation6], %s26
      %s28 = sshll.u32 [#allocation5], 4
      %s29 = int_to_ptr.vmem [resolvable:$true] %s28
      %34 = dma.hbm_to_vmem [thread:$0]  %s1, 256, %s29, [#allocation6], 128, 128, 8
    $region9: #{tpu_custom_call.1} parent=1 // pred_fallthru
      _
    // Predicated region
    $region10: #{tpu_custom_call.1} parent=1 // pred_check
      _
    $region11: #{tpu_custom_call.1} parent=1 // pred_check_branch
      %36 = sbr.rel (0) target = $region13
    $region12: #{tpu_custom_call.1} parent=1 // pred_region
      %s38 = ssub.s32 256, 256
      %39 = vsyncadd [#allocation6], %s38
      %s40 = sshll.u32 [#allocation7], 4
      %s41 = int_to_ptr.vmem [resolvable:$true] %s40
      %46 = dma.hbm_to_vmem [thread:$0]  %s2, 256, %s41, [#allocation6], 128, 128, 8
    $region13: #{tpu_custom_call.1} parent=1 // pred_fallthru
      _
    // Predicated region
    $region14: #{tpu_custom_call.1} parent=1 // pred_check
      _
    $region15: #{tpu_custom_call.1} parent=1 // pred_check_branch
      %48 = sbr.rel (0) target = $region17
    $region16: #{tpu_custom_call.1} parent=1 // pred_region
      %49 = dma.done [#allocation3], 256
    $region17: #{tpu_custom_call.1} parent=1 // pred_fallthru
      _
    // Predicated region
    $region18: #{tpu_custom_call.1} parent=1 // pred_check
      _
    $region19: #{tpu_custom_call.1} parent=1 // pred_check_branch
      %51 = sbr.rel (0) target = $region21
    $region20: #{tpu_custom_call.1} parent=1 // pred_region
      %52 = dma.done [#allocation6], 256
    $region21: #{tpu_custom_call.1} parent=1 // pred_fallthru
      _
    // Predicated region
    $region22: #{tpu_custom_call.1} parent=1 // pred_check
      _
    $region23: #{tpu_custom_call.1} parent=1 // pred_check_branch
      %54 = sbr.rel (0) target = $region25
    $region24: #{tpu_custom_call.1} parent=1 // pred_region
      %55 = dma.done [#allocation6], 256
    $region25: #{tpu_custom_call.1} parent=1 // pred_fallthru
      _
    %v56 = vld [vmem:[#allocation2] sm:$0xff]
    %v57 = vld [vmem:[#allocation5] sm:$0xff]
    %v58 = vld [vmem:[#allocation7] sm:$0xff]
    %v59 = vand.u32 2147483647, %v56
    %v61 = vcombine.high %v59, %v59
    %vm63 = vcmask 1043456
    %v64 = vsel %vm63, %v59, 0.0
    %v65 = vrot.slane %v64, 4
    %v66 = vadd.f32 %v64, %v65
    %v67 = vrot.slane %v66, 2
    %v68 = vadd.f32 %v66, %v67
    %v69 = vrot.slane %v68, 1
    %v70 = vadd.f32 %v68, %v69
    %v71 = vsel %vm63, %v61, 0.0
    %v72 = vrot.slane %v71, 4
    %v73 = vadd.f32 %v71, %v72
    %v74 = vrot.slane %v73, 2
    %v75 = vadd.f32 %v73, %v74
    %v76 = vrot.slane %v75, 1
    %v77 = vadd.f32 %v75, %v76
    %v78 = vmax.f32 %v70, 1e-12
    %v79 = vmax.f32 %v77, 1e-12
    %v80 = vrcp.pop %v78
    %v81 = vrcp.pop %v79
    %v82 = vand.u32 2147483647, %v57
    %v84 = vcombine.high %v82, %v82
    %v86 = vsel %vm63, %v82, 0.0
    %v87 = vrot.slane %v86, 4
    %v88 = vadd.f32 %v86, %v87
    %v89 = vrot.slane %v88, 2
    %v90 = vadd.f32 %v88, %v89
    %v91 = vrot.slane %v90, 1
    %v92 = vadd.f32 %v90, %v91
    %v93 = vsel %vm63, %v84, 0.0
    %v94 = vrot.slane %v93, 4
    %v95 = vadd.f32 %v93, %v94
    %v96 = vrot.slane %v95, 2
    %v97 = vadd.f32 %v95, %v96
    %v98 = vrot.slane %v97, 1
    %v99 = vadd.f32 %v97, %v98
    %v100 = vmax.f32 %v92, 1e-12
    %v101 = vmax.f32 %v99, 1e-12
    %v102 = vrcp.pop %v100
    %v103 = vrcp.pop %v101
    %v104 = vand.u32 2147483647, %v58
    %v106 = vcombine.high %v104, %v104
    %v108 = vsel %vm63, %v104, 0.0
    %v109 = vrot.slane %v108, 4
    %v110 = vadd.f32 %v108, %v109
    %v111 = vrot.slane %v110, 2
    %v112 = vadd.f32 %v110, %v111
    %v113 = vrot.slane %v112, 1
    %v114 = vadd.f32 %v112, %v113
    %v115 = vsel %vm63, %v106, 0.0
    %v116 = vrot.slane %v115, 4
    %v117 = vadd.f32 %v115, %v116
    %v118 = vrot.slane %v117, 2
    %v119 = vadd.f32 %v117, %v118
    %v120 = vrot.slane %v119, 1
    %v121 = vadd.f32 %v119, %v120
    %v122 = vmax.f32 %v114, 1e-12
    %v123 = vmax.f32 %v121, 1e-12
    %v124 = vrcp.pop %v122
    %v125 = vrcp.pop %v123
    %v126 = vmul.f32 %v80, 14.285714
    %v127 = vmul.f32 %v81, 14.285714
    %v130 = vcombine.low %v126, %v127
    %v132 = vmul.f32 %v56, %v130
    %v135 = vcombine.low %v102, %v103
    %v137 = vmul.f32 %v57, %v135
    %v140 = vcombine.low %v124, %v125
    %v142 = vmul.f32 %v58, %v140
    %v143 = vmul.f32 %v132, %v137
    %v145 = vcombine.high %v143, %v143
    %v147 = vsel %vm63, %v143, 0.0
    %v148 = vrot.slane %v147, 4
    %v149 = vadd.f32 %v147, %v148
    %v150 = vrot.slane %v149, 2
    %v151 = vadd.f32 %v149, %v150
    %v152 = vrot.slane %v151, 1
    %v153 = vadd.f32 %v151, %v152
    %v154 = vsel %vm63, %v145, 0.0
    %v155 = vrot.slane %v154, 4
    %v156 = vadd.f32 %v154, %v155
    %v157 = vrot.slane %v156, 2
    %v158 = vadd.f32 %v156, %v157
    %v159 = vrot.slane %v158, 1
    %v160 = vadd.f32 %v158, %v159
    %v162 = vcombine.high %v142, %v142
    %164 = vxpose.xlu0.b32.start [1/16] %v142, 128
    %165 = vxpose.xlu0.b32.cont [2/16] 0.0, 128
    %166 = vxpose.xlu0.b32.cont [3/16] 0.0, 128
    %167 = vxpose.xlu0.b32.cont [4/16] 0.0, 128
    %168 = vxpose.xlu0.b32.cont [5/16] 0.0, 128
    %169 = vxpose.xlu0.b32.cont [6/16] 0.0, 128
    %170 = vxpose.xlu0.b32.cont [7/16] 0.0, 128
    %171 = vxpose.xlu0.b32.cont [8/16] 0.0, 128
    %172 = vxpose.xlu0.b32.cont [9/16] 0.0, 128
    %173 = vxpose.xlu0.b32.cont [10/16] 0.0, 128
    %174 = vxpose.xlu0.b32.cont [11/16] 0.0, 128
    %175 = vxpose.xlu0.b32.cont [12/16] 0.0, 128
    %176 = vxpose.xlu0.b32.cont [13/16] 0.0, 128
    %177 = vxpose.xlu0.b32.cont [14/16] 0.0, 128
    %178 = vxpose.xlu0.b32.cont [15/16] 0.0, 128
    %179 = vxpose.xlu0.b32.end [16/16] 0.0, 128
    %v180 = vpop.trf.xlu0
    %v181 = vpop.trf.xlu0
    %v182 = vpop.trf.xlu0
    %v183 = vpop.trf.xlu0
    %v184 = vpop.trf.xlu0
    %v185 = vpop.trf.xlu0
    %v186 = vpop.trf.xlu0
    %v187 = vpop.trf.xlu0
    %v188 = vpop.trf.xlu0
    %v189 = vpop.trf.xlu0
    %v190 = vpop.trf.xlu0
    %v191 = vpop.trf.xlu0
    %v192 = vpop.trf.xlu0
    %v193 = vpop.trf.xlu0
    %v194 = vpop.trf.xlu0
    %v195 = vpop.trf.xlu0
    %196 = vxpose.xlu0.b32.start [1/16] %v162, 128
    %197 = vxpose.xlu0.b32.cont [2/16] 0.0, 128
    %198 = vxpose.xlu0.b32.cont [3/16] 0.0, 128
    %199 = vxpose.xlu0.b32.cont [4/16] 0.0, 128
    %200 = vxpose.xlu0.b32.cont [5/16] 0.0, 128
    %201 = vxpose.xlu0.b32.cont [6/16] 0.0, 128
    %202 = vxpose.xlu0.b32.cont [7/16] 0.0, 128
    %203 = vxpose.xlu0.b32.cont [8/16] 0.0, 128
    %204 = vxpose.xlu0.b32.cont [9/16] 0.0, 128
    %205 = vxpose.xlu0.b32.cont [10/16] 0.0, 128
    %206 = vxpose.xlu0.b32.cont [11/16] 0.0, 128
    %207 = vxpose.xlu0.b32.cont [12/16] 0.0, 128
    %208 = vxpose.xlu0.b32.cont [13/16] 0.0, 128
    %209 = vxpose.xlu0.b32.cont [14/16] 0.0, 128
    %210 = vxpose.xlu0.b32.cont [15/16] 0.0, 128
    %211 = vxpose.xlu0.b32.end [16/16] 0.0, 128
    %v212 = vpop.trf.xlu0
    %v213 = vpop.trf.xlu0
    %v214 = vpop.trf.xlu0
    %v215 = vpop.trf.xlu0
    %v216 = vpop.trf.xlu0
    %v217 = vpop.trf.xlu0
    %v218 = vpop.trf.xlu0
    %v219 = vpop.trf.xlu0
    %v220 = vpop.trf.xlu0
    %v221 = vpop.trf.xlu0
    %v222 = vpop.trf.xlu0
    %v223 = vpop.trf.xlu0
    %v224 = vpop.trf.xlu0
    %v225 = vpop.trf.xlu0
    %v226 = vpop.trf.xlu0
    %v227 = vpop.trf.xlu0
    %v229 = vcombine.high %v132, %v132
    %vm230 = vcmask 31744
    %v232 = vsel %vm230, %v180, 0
    %v235 = vsel %vm230, %v181, 0
    %v238 = vsel %vm230, %v182, 0
    %v241 = vsel %vm230, %v183, 0
    %v244 = vsel %vm230, %v184, 0
    %v247 = vsel %vm230, %v185, 0
    %v250 = vsel %vm230, %v186, 0
    %v253 = vsel %vm230, %v187, 0
    %v256 = vsel %vm230, %v188, 0
    %v259 = vsel %vm230, %v189, 0
    %v262 = vsel %vm230, %v190, 0
    %v265 = vsel %vm230, %v191, 0
    %v268 = vsel %vm230, %v192, 0
    %v271 = vsel %vm230, %v193, 0
    %v274 = vsel %vm230, %v194, 0
    %v277 = vsel %vm230, %v195, 0
    %v280 = vsel %vm230, %v212, 0
    %v283 = vsel %vm230, %v213, 0
    %v286 = vsel %vm230, %v214, 0
    %v289 = vsel %vm230, %v215, 0
    %v292 = vsel %vm230, %v216, 0
    %v295 = vsel %vm230, %v217, 0
    %v298 = vsel %vm230, %v218, 0
    %v301 = vsel %vm230, %v219, 0
    %v304 = vsel %vm230, %v220, 0
    %v307 = vsel %vm230, %v221, 0
    %v310 = vsel %vm230, %v222, 0
    %v313 = vsel %vm230, %v223, 0
    %v316 = vsel %vm230, %v224, 0
    %v319 = vsel %vm230, %v225, 0
    %v322 = vsel %vm230, %v226, 0
    %v325 = vsel %vm230, %v227, 0
    %v327 = vsel %vm63, %v132, 0
    %v329 = vsel %vm63, %v229, 0
    %331 = vmatprep.subr.mxu0 %v329
    %332 = vmatpush1.msra.mxu0 %v327
    %333 = vmatprep.subr.mxu0 0.0
    %334 = vmatpush1.msra.mxu0 0.0
    %335 = vmatprep.subr.mxu0 0.0
    %336 = vmatpush1.msra.mxu0 0.0
    %337 = vmatprep.subr.mxu0 0.0
    %338 = vmatpush1.msra.mxu0 0.0
    %339 = vmatprep.subr.mxu0 0.0
    %340 = vmatpush1.msra.mxu0 0.0
    %341 = vmatprep.subr.mxu0 0.0
    %342 = vmatpush1.msra.mxu0 0.0
    %343 = vmatprep.subr.mxu0 0.0
    %344 = vmatpush1.msra.mxu0 0.0
    %345 = vmatprep.subr.mxu0 0.0
    %346 = vmatpush1.msra.mxu0 0.0
    %347 = vmatprep.subr.mxu0 0.0
    %348 = vmatpush1.msra.mxu0 0.0
    %349 = vmatprep.subr.mxu0 0.0
    %350 = vmatpush1.msra.mxu0 0.0
    %351 = vmatprep.subr.mxu0 0.0
    %352 = vmatpush1.msra.mxu0 0.0
    %353 = vmatprep.subr.mxu0 0.0
    %354 = vmatpush1.msra.mxu0 0.0
    %355 = vmatprep.subr.mxu0 0.0
    %356 = vmatpush1.msra.mxu0 0.0
    %357 = vmatprep.subr.mxu0 0.0
    %358 = vmatpush1.msra.mxu0 0.0
    %359 = vmatprep.subr.mxu0 0.0
    %360 = vmatpush1.msra.mxu0 0.0
    %361 = vmatprep.subr.mxu0 0.0
    %362 = vmatpush1.msra.mxu0 0.0
    %363 = vmatprep.subr.mxu0 0.0
    %364 = vmatpush1.msra.mxu0 0.0
    %365 = vmatprep.subr.mxu0 0.0
    %366 = vmatpush1.msra.mxu0 0.0
    %367 = vmatprep.subr.mxu0 0.0
    %368 = vmatpush1.msra.mxu0 0.0
    %369 = vmatprep.subr.mxu0 0.0
    %370 = vmatpush1.msra.mxu0 0.0
    %371 = vmatprep.subr.mxu0 0.0
    %372 = vmatpush1.msra.mxu0 0.0
    %373 = vmatprep.subr.mxu0 0.0
    %374 = vmatpush1.msra.mxu0 0.0
    %375 = vmatprep.subr.mxu0 0.0
    %376 = vmatpush1.msra.mxu0 0.0
    %377 = vmatprep.subr.mxu0 0.0
    %378 = vmatpush1.msra.mxu0 0.0
    %379 = vmatprep.subr.mxu0 0.0
    %380 = vmatpush1.msra.mxu0 0.0
    %381 = vmatprep.subr.mxu0 0.0
    %382 = vmatpush1.msra.mxu0 0.0
    %383 = vmatprep.subr.mxu0 0.0
    %384 = vmatpush1.msra.mxu0 0.0
    %385 = vmatprep.subr.mxu0 0.0
    %386 = vmatpush1.msra.mxu0 0.0
    %387 = vmatprep.subr.mxu0 0.0
    %388 = vmatpush1.msra.mxu0 0.0
    %389 = vmatprep.subr.mxu0 0.0
    %390 = vmatpush1.msra.mxu0 0.0
    %391 = vmatprep.subr.mxu0 0.0
    %392 = vmatpush1.msra.mxu0 0.0
    %393 = vmatprep.subr.mxu0 0.0
    %394 = vmatpush1.msra.mxu0 0.0
    %395 = vmatprep.mubr.f32.mxu0 0.0
    %396 = vmatmul.mubr.f32.gmra.mrb[0].mxu0 %v232
    %v397 = vpop.f32.mrb[0].mxu0
    %v398 = vadd.f32 0.0, %v397
    %v399 = vpop.f32.mrb[0].mxu0
    %v400 = vadd.f32 0.0, %v399
    %401 = vmatprep.mubr.f32.mxu0 0.0
    %402 = vmatmul.mubr.f32.gmra.mrb[0].mxu0 %v235
    %v403 = vpop.f32.mrb[0].mxu0
    %v404 = vadd.f32 0.0, %v403
    %v405 = vpop.f32.mrb[0].mxu0
    %v406 = vadd.f32 0.0, %v405
    %407 = vmatprep.mubr.f32.mxu0 0.0
    %408 = vmatmul.mubr.f32.gmra.mrb[0].mxu0 %v238
    %v409 = vpop.f32.mrb[0].mxu0
    %v410 = vadd.f32 0.0, %v409
    %v411 = vpop.f32.mrb[0].mxu0
    %v412 = vadd.f32 0.0, %v411
    %413 = vmatprep.mubr.f32.mxu0 0.0
    %414 = vmatmul.mubr.f32.gmra.mrb[0].mxu0 %v241
    %v415 = vpop.f32.mrb[0].mxu0
    %v416 = vadd.f32 0.0, %v415
    %v417 = vpop.f32.mrb[0].mxu0
    %v418 = vadd.f32 0.0, %v417
    %419 = vmatprep.mubr.f32.mxu0 0.0
    %420 = vmatmul.mubr.f32.gmra.mrb[0].mxu0 %v244
    %v421 = vpop.f32.mrb[0].mxu0
    %v422 = vadd.f32 0.0, %v421
    %v423 = vpop.f32.mrb[0].mxu0
    %v424 = vadd.f32 0.0, %v423
    %425 = vmatprep.mubr.f32.mxu0 0.0
    %426 = vmatmul.mubr.f32.gmra.mrb[0].mxu0 %v247
    %v427 = vpop.f32.mrb[0].mxu0
    %v428 = vadd.f32 0.0, %v427
    %v429 = vpop.f32.mrb[0].mxu0
    %v430 = vadd.f32 0.0, %v429
    %431 = vmatprep.mubr.f32.mxu0 0.0
    %432 = vmatmul.mubr.f32.gmra.mrb[0].mxu0 %v250
    %v433 = vpop.f32.mrb[0].mxu0
    %v434 = vadd.f32 0.0, %v433
    %v435 = vpop.f32.mrb[0].mxu0
    %v436 = vadd.f32 0.0, %v435
    %437 = vmatprep.mubr.f32.mxu0 0.0
    %438 = vmatmul.mubr.f32.gmra.mrb[0].mxu0 %v253
    %v439 = vpop.f32.mrb[0].mxu0
    %v440 = vadd.f32 0.0, %v439
    %v441 = vpop.f32.mrb[0].mxu0
    %v442 = vadd.f32 0.0, %v441
    %443 = vmatprep.mubr.f32.mxu0 0.0
    %444 = vmatmul.mubr.f32.gmra.mrb[0].mxu0 %v256
    %v445 = vpop.f32.mrb[0].mxu0
    %v446 = vadd.f32 0.0, %v445
    %v447 = vpop.f32.mrb[0].mxu0
    %v448 = vadd.f32 0.0, %v447
    %449 = vmatprep.mubr.f32.mxu0 0.0
    %450 = vmatmul.mubr.f32.gmra.mrb[0].mxu0 %v259
    %v451 = vpop.f32.mrb[0].mxu0
    %v452 = vadd.f32 0.0, %v451
    %v453 = vpop.f32.mrb[0].mxu0
    %v454 = vadd.f32 0.0, %v453
    %455 = vmatprep.mubr.f32.mxu0 0.0
    %456 = vmatmul.mubr.f32.gmra.mrb[0].mxu0 %v262
    %v457 = vpop.f32.mrb[0].mxu0
    %v458 = vadd.f32 0.0, %v457
    %v459 = vpop.f32.mrb[0].mxu0
    %v460 = vadd.f32 0.0, %v459
    %461 = vmatprep.mubr.f32.mxu0 0.0
    %462 = vmatmul.mubr.f32.gmra.mrb[0].mxu0 %v265
    %v463 = vpop.f32.mrb[0].mxu0
    %v464 = vadd.f32 0.0, %v463
    %v465 = vpop.f32.mrb[0].mxu0
    %v466 = vadd.f32 0.0, %v465
    %467 = vmatprep.mubr.f32.mxu0 0.0
    %468 = vmatmul.mubr.f32.gmra.mrb[0].mxu0 %v268
    %v469 = vpop.f32.mrb[0].mxu0
    %v470 = vadd.f32 0.0, %v469
    %v471 = vpop.f32.mrb[0].mxu0
    %v472 = vadd.f32 0.0, %v471
    %473 = vmatprep.mubr.f32.mxu0 0.0
    %474 = vmatmul.mubr.f32.gmra.mrb[0].mxu0 %v271
    %v475 = vpop.f32.mrb[0].mxu0
    %v476 = vadd.f32 0.0, %v475
    %v477 = vpop.f32.mrb[0].mxu0
    %v478 = vadd.f32 0.0, %v477
    %479 = vmatprep.mubr.f32.mxu0 0.0
    %480 = vmatmul.mubr.f32.gmra.mrb[0].mxu0 %v274
    %v481 = vpop.f32.mrb[0].mxu0
    %v482 = vadd.f32 0.0, %v481
    %v483 = vpop.f32.mrb[0].mxu0
    %v484 = vadd.f32 0.0, %v483
    %485 = vmatprep.mubr.f32.mxu0 0.0
    %486 = vmatmul.mubr.f32.gmra.mrb[0].mxu0 %v277
    %v487 = vpop.f32.mrb[0].mxu0
    %v488 = vadd.f32 0.0, %v487
    %v489 = vpop.f32.mrb[0].mxu0
    %v490 = vadd.f32 0.0, %v489
    %491 = vmatprep.mubr.f32.mxu0 0.0
    %492 = vmatmul.mubr.f32.gmra.mrb[0].mxu0 %v280
    %v493 = vpop.f32.mrb[0].mxu0
    %v494 = vadd.f32 0.0, %v493
    %v495 = vpop.f32.mrb[0].mxu0
    %v496 = vadd.f32 0.0, %v495
    %497 = vmatprep.mubr.f32.mxu0 0.0
    %498 = vmatmul.mubr.f32.gmra.mrb[0].mxu0 %v283
    %v499 = vpop.f32.mrb[0].mxu0
    %v500 = vadd.f32 0.0, %v499
    %v501 = vpop.f32.mrb[0].mxu0
    %v502 = vadd.f32 0.0, %v501
    %503 = vmatprep.mubr.f32.mxu0 0.0
    %504 = vmatmul.mubr.f32.gmra.mrb[0].mxu0 %v286
    %v505 = vpop.f32.mrb[0].mxu0
    %v506 = vadd.f32 0.0, %v505
    %v507 = vpop.f32.mrb[0].mxu0
    %v508 = vadd.f32 0.0, %v507
    %509 = vmatprep.mubr.f32.mxu0 0.0
    %510 = vmatmul.mubr.f32.gmra.mrb[0].mxu0 %v289
    %v511 = vpop.f32.mrb[0].mxu0
    %v512 = vadd.f32 0.0, %v511
    %v513 = vpop.f32.mrb[0].mxu0
    %v514 = vadd.f32 0.0, %v513
    %515 = vmatprep.mubr.f32.mxu0 0.0
    %516 = vmatmul.mubr.f32.gmra.mrb[0].mxu0 %v292
    %v517 = vpop.f32.mrb[0].mxu0
    %v518 = vadd.f32 0.0, %v517
    %v519 = vpop.f32.mrb[0].mxu0
    %v520 = vadd.f32 0.0, %v519
    %521 = vmatprep.mubr.f32.mxu0 0.0
    %522 = vmatmul.mubr.f32.gmra.mrb[0].mxu0 %v295
    %v523 = vpop.f32.mrb[0].mxu0
    %v524 = vadd.f32 0.0, %v523
    %v525 = vpop.f32.mrb[0].mxu0
    %v526 = vadd.f32 0.0, %v525
    %527 = vmatprep.mubr.f32.mxu0 0.0
    %528 = vmatmul.mubr.f32.gmra.mrb[0].mxu0 %v298
    %v529 = vpop.f32.mrb[0].mxu0
    %v530 = vadd.f32 0.0, %v529
    %v531 = vpop.f32.mrb[0].mxu0
    %v532 = vadd.f32 0.0, %v531
    %533 = vmatprep.mubr.f32.mxu0 0.0
    %534 = vmatmul.mubr.f32.gmra.mrb[0].mxu0 %v301
    %v535 = vpop.f32.mrb[0].mxu0
    %v536 = vadd.f32 0.0, %v535
    %v537 = vpop.f32.mrb[0].mxu0
    %v538 = vadd.f32 0.0, %v537
    %539 = vmatprep.mubr.f32.mxu0 0.0
    %540 = vmatmul.mubr.f32.gmra.mrb[0].mxu0 %v304
    %v541 = vpop.f32.mrb[0].mxu0
    %v542 = vadd.f32 0.0, %v541
    %v543 = vpop.f32.mrb[0].mxu0
    %v544 = vadd.f32 0.0, %v543
    %545 = vmatprep.mubr.f32.mxu0 0.0
    %546 = vmatmul.mubr.f32.gmra.mrb[0].mxu0 %v307
    %v547 = vpop.f32.mrb[0].mxu0
    %v548 = vadd.f32 0.0, %v547
    %v549 = vpop.f32.mrb[0].mxu0
    %v550 = vadd.f32 0.0, %v549
    %551 = vmatprep.mubr.f32.mxu0 0.0
    %552 = vmatmul.mubr.f32.gmra.mrb[0].mxu0 %v310
    %v553 = vpop.f32.mrb[0].mxu0
    %v554 = vadd.f32 0.0, %v553
    %v555 = vpop.f32.mrb[0].mxu0
    %v556 = vadd.f32 0.0, %v555
    %557 = vmatprep.mubr.f32.mxu0 0.0
    %558 = vmatmul.mubr.f32.gmra.mrb[0].mxu0 %v313
    %v559 = vpop.f32.mrb[0].mxu0
    %v560 = vadd.f32 0.0, %v559
    %v561 = vpop.f32.mrb[0].mxu0
    %v562 = vadd.f32 0.0, %v561
    %563 = vmatprep.mubr.f32.mxu0 0.0
    %564 = vmatmul.mubr.f32.gmra.mrb[0].mxu0 %v316
    %v565 = vpop.f32.mrb[0].mxu0
    %v566 = vadd.f32 0.0, %v565
    %v567 = vpop.f32.mrb[0].mxu0
    %v568 = vadd.f32 0.0, %v567
    %569 = vmatprep.mubr.f32.mxu0 0.0
    %570 = vmatmul.mubr.f32.gmra.mrb[0].mxu0 %v319
    %v571 = vpop.f32.mrb[0].mxu0
    %v572 = vadd.f32 0.0, %v571
    %v573 = vpop.f32.mrb[0].mxu0
    %v574 = vadd.f32 0.0, %v573
    %575 = vmatprep.mubr.f32.mxu0 0.0
    %576 = vmatmul.mubr.f32.gmra.mrb[0].mxu0 %v322
    %v577 = vpop.f32.mrb[0].mxu0
    %v578 = vadd.f32 0.0, %v577
    %v579 = vpop.f32.mrb[0].mxu0
    %v580 = vadd.f32 0.0, %v579
    %581 = vmatprep.mubr.f32.mxu0 0.0
    %582 = vmatmul.mubr.f32.gmra.mrb[0].mxu0 %v325
    %v583 = vpop.f32.mrb[0].mxu0
    %v584 = vadd.f32 0.0, %v583
    %v585 = vpop.f32.mrb[0].mxu0
    %v586 = vadd.f32 0.0, %v585
    %587 = vdwg.mxu0
    %v588 = vmax.f32 %v398, %v410
    %v589 = vmax.f32 %v404, %v416
    %v590 = vmax.f32 %v588, %v422
    %v591 = vmax.f32 %v589, %v428
    %v592 = vmax.f32 %v590, %v434
    %v593 = vmax.f32 %v591, %v440
    %v594 = vmax.f32 %v592, %v446
    %v595 = vmax.f32 %v593, %v452
    %v596 = vmax.f32 %v594, %v458
    %v597 = vmax.f32 %v595, %v464
    %v598 = vmax.f32 %v596, %v470
    %v599 = vmax.f32 %v597, %v476
    %v600 = vmax.f32 %v598, %v482
    %v601 = vmax.f32 %v599, %v488
    %v602 = vmax.f32 %v600, %v494
    %v603 = vmax.f32 %v601, %v500
    %v604 = vmax.f32 %v602, %v506
    %v605 = vmax.f32 %v603, %v512
    %v606 = vmax.f32 %v604, %v518
    %v607 = vmax.f32 %v605, %v524
    %v608 = vmax.f32 %v606, %v530
    %v609 = vmax.f32 %v607, %v536
    %v610 = vmax.f32 %v608, %v542
    %v611 = vmax.f32 %v609, %v548
    %v612 = vmax.f32 %v610, %v554
    %v613 = vmax.f32 %v611, %v560
    %v614 = vmax.f32 %v612, %v566
    %v615 = vmax.f32 %v613, %v572
    %v616 = vmax.f32 %v614, %v578
    %v617 = vmax.f32 %v615, %v584
    %v618 = vmax.f32 %v616, %v617
    %v619 = vrot.slane %v618, 4
    %v620 = vmax.f32 %v618, %v619
    %v621 = vrot.slane %v620, 2
    %v622 = vmax.f32 %v620, %v621
    %v623 = vrot.slane %v622, 1
    %v624 = vmax.f32 %v622, %v623
    %v625 = vmax.f32 %v400, %v412
    %v626 = vmax.f32 %v406, %v418
    %v627 = vmax.f32 %v625, %v424
    %v628 = vmax.f32 %v626, %v430
    %v629 = vmax.f32 %v627, %v436
    %v630 = vmax.f32 %v628, %v442
    %v631 = vmax.f32 %v629, %v448
    %v632 = vmax.f32 %v630, %v454
    %v633 = vmax.f32 %v631, %v460
    %v634 = vmax.f32 %v632, %v466
    %v635 = vmax.f32 %v633, %v472
    %v636 = vmax.f32 %v634, %v478
    %v637 = vmax.f32 %v635, %v484
    %v638 = vmax.f32 %v636, %v490
    %v639 = vmax.f32 %v637, %v496
    %v640 = vmax.f32 %v638, %v502
    %v641 = vmax.f32 %v639, %v508
    %v642 = vmax.f32 %v640, %v514
    %v643 = vmax.f32 %v641, %v520
    %v644 = vmax.f32 %v642, %v526
    %v645 = vmax.f32 %v643, %v532
    %v646 = vmax.f32 %v644, %v538
    %v647 = vmax.f32 %v645, %v544
    %v648 = vmax.f32 %v646, %v550
    %v649 = vmax.f32 %v647, %v556
    %v650 = vmax.f32 %v648, %v562
    %v651 = vmax.f32 %v649, %v568
    %v652 = vmax.f32 %v650, %v574
    %v653 = vmax.f32 %v651, %v580
    %v654 = vmax.f32 %v652, %v586
    %v655 = vmax.f32 %v653, %v654
    %v656 = vrot.slane %v655, 4
    %v657 = vmax.f32 %v655, %v656
    %v658 = vrot.slane %v657, 2
    %v659 = vmax.f32 %v657, %v658
    %v660 = vrot.slane %v659, 1
    %v661 = vmax.f32 %v659, %v660
    %v662 = vsub.f32 %v398, %v624
    %v663 = vsub.f32 %v400, %v661
    %v664 = vsub.f32 %v404, %v624
    %v665 = vsub.f32 %v406, %v661
    %v666 = vsub.f32 %v410, %v624
    %v667 = vsub.f32 %v412, %v661
    %v668 = vsub.f32 %v416, %v624
    %v669 = vsub.f32 %v418, %v661
    %v670 = vsub.f32 %v422, %v624
    %v671 = vsub.f32 %v424, %v661
    %v672 = vsub.f32 %v428, %v624
    %v673 = vsub.f32 %v430, %v661
    %v674 = vsub.f32 %v434, %v624
    %v675 = vsub.f32 %v436, %v661
    %v676 = vsub.f32 %v440, %v624
    %v677 = vsub.f32 %v442, %v661
    %v678 = vsub.f32 %v446, %v624
    %v679 = vsub.f32 %v448, %v661
    %v680 = vsub.f32 %v452, %v624
    %v681 = vsub.f32 %v454, %v661
    %v682 = vsub.f32 %v458, %v624
    %v683 = vsub.f32 %v460, %v661
    %v684 = vsub.f32 %v464, %v624
    %v685 = vsub.f32 %v466, %v661
    %v686 = vsub.f32 %v470, %v624
    %v687 = vsub.f32 %v472, %v661
    %v688 = vsub.f32 %v476, %v624
    %v689 = vsub.f32 %v478, %v661
    %v690 = vsub.f32 %v482, %v624
    %v691 = vsub.f32 %v484, %v661
    %v692 = vsub.f32 %v488, %v624
    %v693 = vsub.f32 %v490, %v661
    %v694 = vsub.f32 %v494, %v624
    %v695 = vsub.f32 %v496, %v661
    %v696 = vsub.f32 %v500, %v624
    %v697 = vsub.f32 %v502, %v661
    %v698 = vsub.f32 %v506, %v624
    %v699 = vsub.f32 %v508, %v661
    %v700 = vsub.f32 %v512, %v624
    %v701 = vsub.f32 %v514, %v661
    %v702 = vsub.f32 %v518, %v624
    %v703 = vsub.f32 %v520, %v661
    %v704 = vsub.f32 %v524, %v624
    %v705 = vsub.f32 %v526, %v661
    %v706 = vsub.f32 %v530, %v624
    %v707 = vsub.f32 %v532, %v661
    %v708 = vsub.f32 %v536, %v624
    %v709 = vsub.f32 %v538, %v661
    %v710 = vsub.f32 %v542, %v624
    %v711 = vsub.f32 %v544, %v661
    %v712 = vsub.f32 %v548, %v624
    %v713 = vsub.f32 %v550, %v661
    %v714 = vsub.f32 %v554, %v624
    %v715 = vsub.f32 %v556, %v661
    %v716 = vsub.f32 %v560, %v624
    %v717 = vsub.f32 %v562, %v661
    %v718 = vsub.f32 %v566, %v624
    %v719 = vsub.f32 %v568, %v661
    %v720 = vsub.f32 %v572, %v624
    %v721 = vsub.f32 %v574, %v661
    %v722 = vsub.f32 %v578, %v624
    %v723 = vsub.f32 %v580, %v661
    %v724 = vsub.f32 %v584, %v624
    %v725 = vsub.f32 %v586, %v661
    %v726 = vmul.f32 %v662, 1.442695
    %v727 = vpow.pop %v726
    %v728 = vmul.f32 %v663, 1.442695
    %v729 = vpow.pop %v728
    %v730 = vmul.f32 %v664, 1.442695
    %v731 = vpow.pop %v730
    %v732 = vmul.f32 %v665, 1.442695
    %v733 = vpow.pop %v732
    %v734 = vmul.f32 %v666, 1.442695
    %v735 = vpow.pop %v734
    %v736 = vmul.f32 %v667, 1.442695
    %v737 = vpow.pop %v736
    %v738 = vmul.f32 %v668, 1.442695
    %v739 = vpow.pop %v738
    %v740 = vmul.f32 %v669, 1.442695
    %v741 = vpow.pop %v740
    %v742 = vmul.f32 %v670, 1.442695
    %v743 = vpow.pop %v742
    %v744 = vmul.f32 %v671, 1.442695
    %v745 = vpow.pop %v744
    %v746 = vmul.f32 %v672, 1.442695
    %v747 = vpow.pop %v746
    %v748 = vmul.f32 %v673, 1.442695
    %v749 = vpow.pop %v748
    %v750 = vmul.f32 %v674, 1.442695
    %v751 = vpow.pop %v750
    %v752 = vmul.f32 %v675, 1.442695
    %v753 = vpow.pop %v752
    %v754 = vmul.f32 %v676, 1.442695
    %v755 = vpow.pop %v754
    %v756 = vmul.f32 %v677, 1.442695
    %v757 = vpow.pop %v756
    %v758 = vmul.f32 %v678, 1.442695
    %v759 = vpow.pop %v758
    %v760 = vmul.f32 %v679, 1.442695
    %v761 = vpow.pop %v760
    %v762 = vmul.f32 %v680, 1.442695
    %v763 = vpow.pop %v762
    %v764 = vmul.f32 %v681, 1.442695
    %v765 = vpow.pop %v764
    %v766 = vmul.f32 %v682, 1.442695
    %v767 = vpow.pop %v766
    %v768 = vmul.f32 %v683, 1.442695
    %v769 = vpow.pop %v768
    %v770 = vmul.f32 %v684, 1.442695
    %v771 = vpow.pop %v770
    %v772 = vmul.f32 %v685, 1.442695
    %v773 = vpow.pop %v772
    %v774 = vmul.f32 %v686, 1.442695
    %v775 = vpow.pop %v774
    %v776 = vmul.f32 %v687, 1.442695
    %v777 = vpow.pop %v776
    %v778 = vmul.f32 %v688, 1.442695
    %v779 = vpow.pop %v778
    %v780 = vmul.f32 %v689, 1.442695
    %v781 = vpow.pop %v780
    %v782 = vmul.f32 %v690, 1.442695
    %v783 = vpow.pop %v782
    %v784 = vmul.f32 %v691, 1.442695
    %v785 = vpow.pop %v784
    %v786 = vmul.f32 %v692, 1.442695
    %v787 = vpow.pop %v786
    %v788 = vmul.f32 %v693, 1.442695
    %v789 = vpow.pop %v788
    %v790 = vmul.f32 %v694, 1.442695
    %v791 = vpow.pop %v790
    %v792 = vmul.f32 %v695, 1.442695
    %v793 = vpow.pop %v792
    %v794 = vmul.f32 %v696, 1.442695
    %v795 = vpow.pop %v794
    %v796 = vmul.f32 %v697, 1.442695
    %v797 = vpow.pop %v796
    %v798 = vmul.f32 %v698, 1.442695
    %v799 = vpow.pop %v798
    %v800 = vmul.f32 %v699, 1.442695
    %v801 = vpow.pop %v800
    %v802 = vmul.f32 %v700, 1.442695
    %v803 = vpow.pop %v802
    %v804 = vmul.f32 %v701, 1.442695
    %v805 = vpow.pop %v804
    %v806 = vmul.f32 %v702, 1.442695
    %v807 = vpow.pop %v806
    %v808 = vmul.f32 %v703, 1.442695
    %v809 = vpow.pop %v808
    %v810 = vmul.f32 %v704, 1.442695
    %v811 = vpow.pop %v810
    %v812 = vmul.f32 %v705, 1.442695
    %v813 = vpow.pop %v812
    %v814 = vmul.f32 %v706, 1.442695
    %v815 = vpow.pop %v814
    %v816 = vmul.f32 %v707, 1.442695
    %v817 = vpow.pop %v816
    %v818 = vmul.f32 %v708, 1.442695
    %v819 = vpow.pop %v818
    %v820 = vmul.f32 %v709, 1.442695
    %v821 = vpow.pop %v820
    %v822 = vmul.f32 %v710, 1.442695
    %v823 = vpow.pop %v822
    %v824 = vmul.f32 %v711, 1.442695
    %v825 = vpow.pop %v824
    %v826 = vmul.f32 %v712, 1.442695
    %v827 = vpow.pop %v826
    %v828 = vmul.f32 %v713, 1.442695
    %v829 = vpow.pop %v828
    %v830 = vmul.f32 %v714, 1.442695
    %v831 = vpow.pop %v830
    %v832 = vmul.f32 %v715, 1.442695
    %v833 = vpow.pop %v832
    %v834 = vmul.f32 %v716, 1.442695
    %v835 = vpow.pop %v834
    %v836 = vmul.f32 %v717, 1.442695
    %v837 = vpow.pop %v836
    %v838 = vmul.f32 %v718, 1.442695
    %v839 = vpow.pop %v838
    %v840 = vmul.f32 %v719, 1.442695
    %v841 = vpow.pop %v840
    %v842 = vmul.f32 %v720, 1.442695
    %v843 = vpow.pop %v842
    %v844 = vmul.f32 %v721, 1.442695
    %v845 = vpow.pop %v844
    %v846 = vmul.f32 %v722, 1.442695
    %v847 = vpow.pop %v846
    %v848 = vmul.f32 %v723, 1.442695
    %v849 = vpow.pop %v848
    %v850 = vmul.f32 %v724, 1.442695
    %v851 = vpow.pop %v850
    %v852 = vmul.f32 %v725, 1.442695
    %v853 = vpow.pop %v852
    %v854 = vadd.f32 %v727, %v731
    %v855 = vadd.f32 %v854, %v735
    %v856 = vadd.f32 %v855, %v739
    %v857 = vadd.f32 %v856, %v743
    %v858 = vadd.f32 %v857, %v747
    %v859 = vadd.f32 %v858, %v751
    %v860 = vadd.f32 %v859, %v755
    %v861 = vadd.f32 %v860, %v759
    %v862 = vadd.f32 %v861, %v763
    %v863 = vadd.f32 %v862, %v767
    %v864 = vadd.f32 %v863, %v771
    %v865 = vadd.f32 %v864, %v775
    %v866 = vadd.f32 %v865, %v779
    %v867 = vadd.f32 %v866, %v783
    %v868 = vadd.f32 %v867, %v787
    %v869 = vadd.f32 %v868, %v791
    %v870 = vadd.f32 %v869, %v795
    %v871 = vadd.f32 %v870, %v799
    %v872 = vadd.f32 %v871, %v803
    %v873 = vadd.f32 %v872, %v807
    %v874 = vadd.f32 %v873, %v811
    %v875 = vadd.f32 %v874, %v815
    %v876 = vadd.f32 %v875, %v819
    %v877 = vadd.f32 %v876, %v823
    %v878 = vadd.f32 %v877, %v827
    %v879 = vadd.f32 %v878, %v831
    %v880 = vadd.f32 %v879, %v835
    %v881 = vadd.f32 %v880, %v839
    %v882 = vadd.f32 %v881, %v843
    %v883 = vadd.f32 %v882, %v847
    %v884 = vadd.f32 %v883, %v851
    %v885 = vrot.slane %v884, 4
    %v886 = vadd.f32 %v884, %v885
    %v887 = vrot.slane %v886, 2
    %v888 = vadd.f32 %v886, %v887
    %v889 = vrot.slane %v888, 1
    %v890 = vadd.f32 %v888, %v889
    %v891 = vadd.f32 %v729, %v733
    %v892 = vadd.f32 %v891, %v737
    %v893 = vadd.f32 %v892, %v741
    %v894 = vadd.f32 %v893, %v745
    %v895 = vadd.f32 %v894, %v749
    %v896 = vadd.f32 %v895, %v753
    %v897 = vadd.f32 %v896, %v757
    %v898 = vadd.f32 %v897, %v761
    %v899 = vadd.f32 %v898, %v765
    %v900 = vadd.f32 %v899, %v769
    %v901 = vadd.f32 %v900, %v773
    %v902 = vadd.f32 %v901, %v777
    %v903 = vadd.f32 %v902, %v781
    %v904 = vadd.f32 %v903, %v785
    %v905 = vadd.f32 %v904, %v789
    %v906 = vadd.f32 %v905, %v793
    %v907 = vadd.f32 %v906, %v797
    %v908 = vadd.f32 %v907, %v801
    %v909 = vadd.f32 %v908, %v805
    %v910 = vadd.f32 %v909, %v809
    %v911 = vadd.f32 %v910, %v813
    %v912 = vadd.f32 %v911, %v817
    %v913 = vadd.f32 %v912, %v821
    %v914 = vadd.f32 %v913, %v825
    %v915 = vadd.f32 %v914, %v829
    %v916 = vadd.f32 %v915, %v833
    %v917 = vadd.f32 %v916, %v837
    %v918 = vadd.f32 %v917, %v841
    %v919 = vadd.f32 %v918, %v845
    %v920 = vadd.f32 %v919, %v849
    %v921 = vadd.f32 %v920, %v853
    %v922 = vrot.slane %v921, 4
    %v923 = vadd.f32 %v921, %v922
    %v924 = vrot.slane %v923, 2
    %v925 = vadd.f32 %v923, %v924
    %v926 = vrot.slane %v925, 1
    %v927 = vadd.f32 %v925, %v926
    %v928 = vlog2.pop %v890
    %v929 = vmul.f32 %v928, 0.6931472
    %v930 = vlog2.pop %v927
    %v931 = vmul.f32 %v930, 0.6931472
    %v932 = vadd.f32 %v624, %v929
    %v933 = vadd.f32 %v661, %v931
    %v934 = vsub.f32 %v932, %v153
    %v935 = vsub.f32 %v933, %v160
    %v938 = vcombine.low %v934, %v935
    %v940 = vunpack.c.l.s4 1966171168
    %v941 = vunpack.c.0.s8 %v940
    %v942 = vlaneseq
    %v943 = vshrl.u32 %v942, 7
    %v944 = vsub.s32 %v941, %v943
    %v945 = vrot.slane %v938, %v944
    %v947 = vunpack.c.l.s4 1966171168
    %v948 = vunpack.c.0.s8 %v947
    %v949 = vlaneseq
    %v950 = vshrl.u32 %v949, 7
    %v951 = vsub.s32 %v948, %v950
    %v952 = vrot.slane %v945, %v951
    %v954 = vlaneseq
    %vm955 = vcmp.ge.s32.totalorder %v954, 0
    %vm956 = vcmp.lt.s32.totalorder %v954, 256
    %vm957 = vmand %vm955, %vm956
    %958 = vst.msk [vmem:[#allocation8] sm:$0x3] %vm957, %v952
    %s959 = scalar_lea.vmem [#allocation2], 8
    %v960 = vld [vmem:[%s959] sm:$0xff]
    %s961 = scalar_lea.vmem [#allocation5], 8
    %v962 = vld [vmem:[%s961] sm:$0xff]
    %s963 = scalar_lea.vmem [#allocation7], 8
    %v964 = vld [vmem:[%s963] sm:$0xff]
    %v965 = vand.u32 2147483647, %v960
    %v967 = vcombine.high %v965, %v965
    %v969 = vsel %vm63, %v965, 0.0
    %v970 = vrot.slane %v969, 4
    %v971 = vadd.f32 %v969, %v970
    %v972 = vrot.slane %v971, 2
    %v973 = vadd.f32 %v971, %v972
    %v974 = vrot.slane %v973, 1
    %v975 = vadd.f32 %v973, %v974
    %v976 = vsel %vm63, %v967, 0.0
    %v977 = vrot.slane %v976, 4
    %v978 = vadd.f32 %v976, %v977
    %v979 = vrot.slane %v978, 2
    %v980 = vadd.f32 %v978, %v979
    %v981 = vrot.slane %v980, 1
    %v982 = vadd.f32 %v980, %v981
    %v983 = vmax.f32 %v975, 1e-12
    %v984 = vmax.f32 %v982, 1e-12
    %v985 = vrcp.pop %v983
    %v986 = vrcp.pop %v984
    %v987 = vand.u32 2147483647, %v962
    %v989 = vcombine.high %v987, %v987
    %v991 = vsel %vm63, %v987, 0.0
    %v992 = vrot.slane %v991, 4
    %v993 = vadd.f32 %v991, %v992
    %v994 = vrot.slane %v993, 2
    %v995 = vadd.f32 %v993, %v994
    %v996 = vrot.slane %v995, 1
    %v997 = vadd.f32 %v995, %v996
    %v998 = vsel %vm63, %v989, 0.0
    %v999 = vrot.slane %v998, 4
    %v1000 = vadd.f32 %v998, %v999
    %v1001 = vrot.slane %v1000, 2
    %v1002 = vadd.f32 %v1000, %v1001
    %v1003 = vrot.slane %v1002, 1
    %v1004 = vadd.f32 %v1002, %v1003
    %v1005 = vmax.f32 %v997, 1e-12
    %v1006 = vmax.f32 %v1004, 1e-12
    %v1007 = vrcp.pop %v1005
    %v1008 = vrcp.pop %v1006
    %v1009 = vand.u32 2147483647, %v964
    %v1011 = vcombine.high %v1009, %v1009
    %v1013 = vsel %vm63, %v1009, 0.0
    %v1014 = vrot.slane %v1013, 4
    %v1015 = vadd.f32 %v1013, %v1014
    %v1016 = vrot.slane %v1015, 2
    %v1017 = vadd.f32 %v1015, %v1016
    %v1018 = vrot.slane %v1017, 1
    %v1019 = vadd.f32 %v1017, %v1018
    %v1020 = vsel %vm63, %v1011, 0.0
    %v1021 = vrot.slane %v1020, 4
    %v1022 = vadd.f32 %v1020, %v1021
    %v1023 = vrot.slane %v1022, 2
    %v1024 = vadd.f32 %v1022, %v1023
    %v1025 = vrot.slane %v1024, 1
    %v1026 = vadd.f32 %v1024, %v1025
    %v1027 = vmax.f32 %v1019, 1e-12
    %v1028 = vmax.f32 %v1026, 1e-12
    %v1029 = vrcp.pop %v1027
    %v1030 = vrcp.pop %v1028
    %v1031 = vmul.f32 %v985, 14.285714
    %v1032 = vmul.f32 %v986, 14.285714
    %v1035 = vcombine.low %v1031, %v1032
    %v1037 = vmul.f32 %v960, %v1035
    %v1040 = vcombine.low %v1007, %v1008
    %v1042 = vmul.f32 %v962, %v1040
    %v1045 = vcombine.low %v1029, %v1030
    %v1047 = vmul.f32 %v964, %v1045
    %v1048 = vmul.f32 %v1037, %v1042
    %v1050 = vcombine.high %v1048, %v1048
    %v1052 = vsel %vm63, %v1048, 0.0
    %v1053 = vrot.slane %v1052, 4
    %v1054 = vadd.f32 %v1052, %v1053
    %v1055 = vrot.slane %v1054, 2
    %v1056 = vadd.f32 %v1054, %v1055
    %v1057 = vrot.slane %v1056, 1
    %v1058 = vadd.f32 %v1056, %v1057
    %v1059 = vsel %vm63, %v1050, 0.0
    %v1060 = vrot.slane %v1059, 4
    %v1061 = vadd.f32 %v1059, %v1060
    %v1062 = vrot.slane %v1061, 2
    %v1063 = vadd.f32 %v1061, %v1062
    %v1064 = vrot.slane %v1063, 1
    %v1065 = vadd.f32 %v1063, %v1064
    %v1067 = vcombine.high %v1047, %v1047
    %1069 = vxpose.xlu0.b32.start [1/16] %v1047, 128
    %1070 = vxpose.xlu0.b32.cont [2/16] 0.0, 128
    %1071 = vxpose.xlu0.b32.cont [3/16] 0.0, 128
    %1072 = vxpose.xlu0.b32.cont [4/16] 0.0, 128
    %1073 = vxpose.xlu0.b32.cont [5/16] 0.0, 128
    %1074 = vxpose.xlu0.b32.cont [6/16] 0.0, 128
    %1075 = vxpose.xlu0.b32.cont [7/16] 0.0, 128
    %1076 = vxpose.xlu0.b32.cont [8/16] 0.0, 128
    %1077 = vxpose.xlu0.b32.cont [9/16] 0.0, 128
    %1078 = vxpose.xlu0.b32.cont [10/16] 0.0, 128
    %1079 = vxpose.xlu0.b32.cont [11/16] 0.0, 128
    %1080 = vxpose.xlu0.b32.cont [12/16] 0.0, 128
    %1081 = vxpose.xlu0.b32.cont [13/16] 0.0, 128
    %1082 = vxpose.xlu0.b32.cont [14/16] 0.0, 128
    %1083 = vxpose.xlu0.b32.cont [15/16] 0.0, 128
    %1084 = vxpose.xlu0.b32.end [16/16] 0.0, 128
    %v1085 = vpop.trf.xlu0
    %v1086 = vpop.trf.xlu0
    %v1087 = vpop.trf.xlu0
    %v1088 = vpop.trf.xlu0
    %v1089 = vpop.trf.xlu0
    %v1090 = vpop.trf.xlu0
    %v1091 = vpop.trf.xlu0
    %v1092 = vpop.trf.xlu0
    %v1093 = vpop.trf.xlu0
    %v1094 = vpop.trf.xlu0
    %v1095 = vpop.trf.xlu0
    %v1096 = vpop.trf.xlu0
    %v1097 = vpop.trf.xlu0
    %v1098 = vpop.trf.xlu0
    %v1099 = vpop.trf.xlu0
    %v1100 = vpop.trf.xlu0
    %1101 = vxpose.xlu0.b32.start [1/16] %v1067, 128
    %1102 = vxpose.xlu0.b32.cont [2/16] 0.0, 128
    %1103 = vxpose.xlu0.b32.cont [3/16] 0.0, 128
    %1104 = vxpose.xlu0.b32.cont [4/16] 0.0, 128
    %1105 = vxpose.xlu0.b32.cont [5/16] 0.0, 128
    %1106 = vxpose.xlu0.b32.cont [6/16] 0.0, 128
    %1107 = vxpose.xlu0.b32.cont [7/16] 0.0, 128
    %1108 = vxpose.xlu0.b32.cont [8/16] 0.0, 128
    %1109 = vxpose.xlu0.b32.cont [9/16] 0.0, 128
    %1110 = vxpose.xlu0.b32.cont [10/16] 0.0, 128
    %1111 = vxpose.xlu0.b32.cont [11/16] 0.0, 128
    %1112 = vxpose.xlu0.b32.cont [12/16] 0.0, 128
    %1113 = vxpose.xlu0.b32.cont [13/16] 0.0, 128
    %1114 = vxpose.xlu0.b32.cont [14/16] 0.0, 128
    %1115 = vxpose.xlu0.b32.cont [15/16] 0.0, 128
    %1116 = vxpose.xlu0.b32.end [16/16] 0.0, 128
    %v1117 = vpop.trf.xlu0
    %v1118 = vpop.trf.xlu0
    %v1119 = vpop.trf.xlu0
    %v1120 = vpop.trf.xlu0
    %v1121 = vpop.trf.xlu0
    %v1122 = vpop.trf.xlu0
    %v1123 = vpop.trf.xlu0
    %v1124 = vpop.trf.xlu0
    %v1125 = vpop.trf.xlu0
    %v1126 = vpop.trf.xlu0
    %v1127 = vpop.trf.xlu0
    %v1128 = vpop.trf.xlu0
    %v1129 = vpop.trf.xlu0
    %v1130 = vpop.trf.xlu0
    %v1131 = vpop.trf.xlu0
    %v1132 = vpop.trf.xlu0
    %v1134 = vcombine.high %v1037, %v1037
    %v1136 = vsel %vm230, %v1085, 0
    %v1139 = vsel %vm230, %v1086, 0
    %v1142 = vsel %vm230, %v1087, 0
    %v1145 = vsel %vm230, %v1088, 0
    %v1148 = vsel %vm230, %v1089, 0
    %v1151 = vsel %vm230, %v1090, 0
    %v1154 = vsel %vm230, %v1091, 0
    %v1157 = vsel %vm230, %v1092, 0
    %v1160 = vsel %vm230, %v1093, 0
    %v1163 = vsel %vm230, %v1094, 0
    %v1166 = vsel %vm230, %v1095, 0
    %v1169 = vsel %vm230, %v1096, 0
    %v1172 = vsel %vm230, %v1097, 0
    %v1175 = vsel %vm230, %v1098, 0
    %v1178 = vsel %vm230, %v1099, 0
    %v1181 = vsel %vm230, %v1100, 0
    %v1184 = vsel %vm230, %v1117, 0
    %v1187 = vsel %vm230, %v1118, 0
    %v1190 = vsel %vm230, %v1119, 0
    %v1193 = vsel %vm230, %v1120, 0
    %v1196 = vsel %vm230, %v1121, 0
    %v1199 = vsel %vm230, %v1122, 0
    %v1202 = vsel %vm230, %v1123, 0
    %v1205 = vsel %vm230, %v1124, 0
    %v1208 = vsel %vm230, %v1125, 0
    %v1211 = vsel %vm230, %v1126, 0
    %v1214 = vsel %vm230, %v1127, 0
    %v1217 = vsel %vm230, %v1128, 0
    %v1220 = vsel %vm230, %v1129, 0
    %v1223 = vsel %vm230, %v1130, 0
    %v1226 = vsel %vm230, %v1131, 0
    %v1229 = vsel %vm230, %v1132, 0
    %v1231 = vsel %vm63, %v1037, 0
    %v1233 = vsel %vm63, %v1134, 0
    %1235 = vmatprep.subr.mxu0 %v1233
    %1236 = vmatpush1.msra.mxu0 %v1231
    %1237 = vmatprep.subr.mxu0 0.0
    %1238 = vmatpush1.msra.mxu0 0.0
    %1239 = vmatprep.subr.mxu0 0.0
    %1240 = vmatpush1.msra.mxu0 0.0
    %1241 = vmatprep.subr.mxu0 0.0
    %1242 = vmatpush1.msra.mxu0 0.0
    %1243 = vmatprep.subr.mxu0 0.0
    %1244 = vmatpush1.msra.mxu0 0.0
    %1245 = vmatprep.subr.mxu0 0.0
    %1246 = vmatpush1.msra.mxu0 0.0
    %1247 = vmatprep.subr.mxu0 0.0
    %1248 = vmatpush1.msra.mxu0 0.0
    %1249 = vmatprep.subr.mxu0 0.0
    %1250 = vmatpush1.msra.mxu0 0.0
    %1251 = vmatprep.subr.mxu0 0.0
    %1252 = vmatpush1.msra.mxu0 0.0
    %1253 = vmatprep.subr.mxu0 0.0
    %1254 = vmatpush1.msra.mxu0 0.0
    %1255 = vmatprep.subr.mxu0 0.0
    %1256 = vmatpush1.msra.mxu0 0.0
    %1257 = vmatprep.subr.mxu0 0.0
    %1258 = vmatpush1.msra.mxu0 0.0
    %1259 = vmatprep.subr.mxu0 0.0
    %1260 = vmatpush1.msra.mxu0 0.0
    %1261 = vmatprep.subr.mxu0 0.0
    %1262 = vmatpush1.msra.mxu0 0.0
    %1263 = vmatprep.subr.mxu0 0.0
    %1264 = vmatpush1.msra.mxu0 0.0
    %1265 = vmatprep.subr.mxu0 0.0
    %1266 = vmatpush1.msra.mxu0 0.0
    %1267 = vmatprep.subr.mxu0 0.0
    %1268 = vmatpush1.msra.mxu0 0.0
    %1269 = vmatprep.subr.mxu0 0.0
    %1270 = vmatpush1.msra.mxu0 0.0
    %1271 = vmatprep.subr.mxu0 0.0
    %1272 = vmatpush1.msra.mxu0 0.0
    %1273 = vmatprep.subr.mxu0 0.0
    %1274 = vmatpush1.msra.mxu0 0.0
    %1275 = vmatprep.subr.mxu0 0.0
    %1276 = vmatpush1.msra.mxu0 0.0
    %1277 = vmatprep.subr.mxu0 0.0
    %1278 = vmatpush1.msra.mxu0 0.0
    %1279 = vmatprep.subr.mxu0 0.0
    %1280 = vmatpush1.msra.mxu0 0.0
    %1281 = vmatprep.subr.mxu0 0.0
    %1282 = vmatpush1.msra.mxu0 0.0
    %1283 = vmatprep.subr.mxu0 0.0
    %1284 = vmatpush1.msra.mxu0 0.0
    %1285 = vmatprep.subr.mxu0 0.0
    %1286 = vmatpush1.msra.mxu0 0.0
    %1287 = vmatprep.subr.mxu0 0.0
    %1288 = vmatpush1.msra.mxu0 0.0
    %1289 = vmatprep.subr.mxu0 0.0
    %1290 = vmatpush1.msra.mxu0 0.0
    %1291 = vmatprep.subr.mxu0 0.0
    %1292 = vmatpush1.msra.mxu0 0.0
    %1293 = vmatprep.subr.mxu0 0.0
    %1294 = vmatpush1.msra.mxu0 0.0
    %1295 = vmatprep.subr.mxu0 0.0
    %1296 = vmatpush1.msra.mxu0 0.0
    %1297 = vmatprep.subr.mxu0 0.0
    %1298 = vmatpush1.msra.mxu0 0.0
    %1299 = vmatprep.mubr.f32.mxu0 0.0
    %1300 = vmatmul.mubr.f32.gmra.mrb[0].mxu0 %v1136
    %v1301 = vpop.f32.mrb[0].mxu0
    %v1302 = vadd.f32 0.0, %v1301
    %v1303 = vpop.f32.mrb[0].mxu0
    %v1304 = vadd.f32 0.0, %v1303
    %1305 = vmatprep.mubr.f32.mxu0 0.0
    %1306 = vmatmul.mubr.f32.gmra.mrb[0].mxu0 %v1139
    %v1307 = vpop.f32.mrb[0].mxu0
    %v1308 = vadd.f32 0.0, %v1307
    %v1309 = vpop.f32.mrb[0].mxu0
    %v1310 = vadd.f32 0.0, %v1309
    %1311 = vmatprep.mubr.f32.mxu0 0.0
    %1312 = vmatmul.mubr.f32.gmra.mrb[0].mxu0 %v1142
    %v1313 = vpop.f32.mrb[0].mxu0
    %v1314 = vadd.f32 0.0, %v1313
    %v1315 = vpop.f32.mrb[0].mxu0
    %v1316 = vadd.f32 0.0, %v1315
    %1317 = vmatprep.mubr.f32.mxu0 0.0
    %1318 = vmatmul.mubr.f32.gmra.mrb[0].mxu0 %v1145
    %v1319 = vpop.f32.mrb[0].mxu0
    %v1320 = vadd.f32 0.0, %v1319
    %v1321 = vpop.f32.mrb[0].mxu0
    %v1322 = vadd.f32 0.0, %v1321
    %1323 = vmatprep.mubr.f32.mxu0 0.0
    %1324 = vmatmul.mubr.f32.gmra.mrb[0].mxu0 %v1148
    %v1325 = vpop.f32.mrb[0].mxu0
    %v1326 = vadd.f32 0.0, %v1325
    %v1327 = vpop.f32.mrb[0].mxu0
    %v1328 = vadd.f32 0.0, %v1327
    %1329 = vmatprep.mubr.f32.mxu0 0.0
    %1330 = vmatmul.mubr.f32.gmra.mrb[0].mxu0 %v1151
    %v1331 = vpop.f32.mrb[0].mxu0
    %v1332 = vadd.f32 0.0, %v1331
    %v1333 = vpop.f32.mrb[0].mxu0
    %v1334 = vadd.f32 0.0, %v1333
    %1335 = vmatprep.mubr.f32.mxu0 0.0
    %1336 = vmatmul.mubr.f32.gmra.mrb[0].mxu0 %v1154
    %v1337 = vpop.f32.mrb[0].mxu0
    %v1338 = vadd.f32 0.0, %v1337
    %v1339 = vpop.f32.mrb[0].mxu0
    %v1340 = vadd.f32 0.0, %v1339
    %1341 = vmatprep.mubr.f32.mxu0 0.0
    %1342 = vmatmul.mubr.f32.gmra.mrb[0].mxu0 %v1157
    %v1343 = vpop.f32.mrb[0].mxu0
    %v1344 = vadd.f32 0.0, %v1343
    %v1345 = vpop.f32.mrb[0].mxu0
    %v1346 = vadd.f32 0.0, %v1345
    %1347 = vmatprep.mubr.f32.mxu0 0.0
    %1348 = vmatmul.mubr.f32.gmra.mrb[0].mxu0 %v1160
    %v1349 = vpop.f32.mrb[0].mxu0
    %v1350 = vadd.f32 0.0, %v1349
    %v1351 = vpop.f32.mrb[0].mxu0
    %v1352 = vadd.f32 0.0, %v1351
    %1353 = vmatprep.mubr.f32.mxu0 0.0
    %1354 = vmatmul.mubr.f32.gmra.mrb[0].mxu0 %v1163
    %v1355 = vpop.f32.mrb[0].mxu0
    %v1356 = vadd.f32 0.0, %v1355
    %v1357 = vpop.f32.mrb[0].mxu0
    %v1358 = vadd.f32 0.0, %v1357
    %1359 = vmatprep.mubr.f32.mxu0 0.0
    %1360 = vmatmul.mubr.f32.gmra.mrb[0].mxu0 %v1166
    %v1361 = vpop.f32.mrb[0].mxu0
    %v1362 = vadd.f32 0.0, %v1361
    %v1363 = vpop.f32.mrb[0].mxu0
    %v1364 = vadd.f32 0.0, %v1363
    %1365 = vmatprep.mubr.f32.mxu0 0.0
    %1366 = vmatmul.mubr.f32.gmra.mrb[0].mxu0 %v1169
    %v1367 = vpop.f32.mrb[0].mxu0
    %v1368 = vadd.f32 0.0, %v1367
    %v1369 = vpop.f32.mrb[0].mxu0
    %v1370 = vadd.f32 0.0, %v1369
    %1371 = vmatprep.mubr.f32.mxu0 0.0
    %1372 = vmatmul.mubr.f32.gmra.mrb[0].mxu0 %v1172
    %v1373 = vpop.f32.mrb[0].mxu0
    %v1374 = vadd.f32 0.0, %v1373
    %v1375 = vpop.f32.mrb[0].mxu0
    %v1376 = vadd.f32 0.0, %v1375
    %1377 = vmatprep.mubr.f32.mxu0 0.0
    %1378 = vmatmul.mubr.f32.gmra.mrb[0].mxu0 %v1175
    %v1379 = vpop.f32.mrb[0].mxu0
    %v1380 = vadd.f32 0.0, %v1379
    %v1381 = vpop.f32.mrb[0].mxu0
    %v1382 = vadd.f32 0.0, %v1381
    %1383 = vmatprep.mubr.f32.mxu0 0.0
    %1384 = vmatmul.mubr.f32.gmra.mrb[0].mxu0 %v1178
    %v1385 = vpop.f32.mrb[0].mxu0
    %v1386 = vadd.f32 0.0, %v1385
    %v1387 = vpop.f32.mrb[0].mxu0
    %v1388 = vadd.f32 0.0, %v1387
    %1389 = vmatprep.mubr.f32.mxu0 0.0
    %1390 = vmatmul.mubr.f32.gmra.mrb[0].mxu0 %v1181
    %v1391 = vpop.f32.mrb[0].mxu0
    %v1392 = vadd.f32 0.0, %v1391
    %v1393 = vpop.f32.mrb[0].mxu0
    %v1394 = vadd.f32 0.0, %v1393
    %1395 = vmatprep.mubr.f32.mxu0 0.0
    %1396 = vmatmul.mubr.f32.gmra.mrb[0].mxu0 %v1184
    %v1397 = vpop.f32.mrb[0].mxu0
    %v1398 = vadd.f32 0.0, %v1397
    %v1399 = vpop.f32.mrb[0].mxu0
    %v1400 = vadd.f32 0.0, %v1399
    %1401 = vmatprep.mubr.f32.mxu0 0.0
    %1402 = vmatmul.mubr.f32.gmra.mrb[0].mxu0 %v1187
    %v1403 = vpop.f32.mrb[0].mxu0
    %v1404 = vadd.f32 0.0, %v1403
    %v1405 = vpop.f32.mrb[0].mxu0
    %v1406 = vadd.f32 0.0, %v1405
    %1407 = vmatprep.mubr.f32.mxu0 0.0
    %1408 = vmatmul.mubr.f32.gmra.mrb[0].mxu0 %v1190
    %v1409 = vpop.f32.mrb[0].mxu0
    %v1410 = vadd.f32 0.0, %v1409
    %v1411 = vpop.f32.mrb[0].mxu0
    %v1412 = vadd.f32 0.0, %v1411
    %1413 = vmatprep.mubr.f32.mxu0 0.0
    %1414 = vmatmul.mubr.f32.gmra.mrb[0].mxu0 %v1193
    %v1415 = vpop.f32.mrb[0].mxu0
    %v1416 = vadd.f32 0.0, %v1415
    %v1417 = vpop.f32.mrb[0].mxu0
    %v1418 = vadd.f32 0.0, %v1417
    %1419 = vmatprep.mubr.f32.mxu0 0.0
    %1420 = vmatmul.mubr.f32.gmra.mrb[0].mxu0 %v1196
    %v1421 = vpop.f32.mrb[0].mxu0
    %v1422 = vadd.f32 0.0, %v1421
    %v1423 = vpop.f32.mrb[0].mxu0
    %v1424 = vadd.f32 0.0, %v1423
    %1425 = vmatprep.mubr.f32.mxu0 0.0
    %1426 = vmatmul.mubr.f32.gmra.mrb[0].mxu0 %v1199
    %v1427 = vpop.f32.mrb[0].mxu0
    %v1428 = vadd.f32 0.0, %v1427
    %v1429 = vpop.f32.mrb[0].mxu0
    %v1430 = vadd.f32 0.0, %v1429
    %1431 = vmatprep.mubr.f32.mxu0 0.0
    %1432 = vmatmul.mubr.f32.gmra.mrb[0].mxu0 %v1202
    %v1433 = vpop.f32.mrb[0].mxu0
    %v1434 = vadd.f32 0.0, %v1433
    %v1435 = vpop.f32.mrb[0].mxu0
    %v1436 = vadd.f32 0.0, %v1435
    %1437 = vmatprep.mubr.f32.mxu0 0.0
    %1438 = vmatmul.mubr.f32.gmra.mrb[0].mxu0 %v1205
    %v1439 = vpop.f32.mrb[0].mxu0
    %v1440 = vadd.f32 0.0, %v1439
    %v1441 = vpop.f32.mrb[0].mxu0
    %v1442 = vadd.f32 0.0, %v1441
    %1443 = vmatprep.mubr.f32.mxu0 0.0
    %1444 = vmatmul.mubr.f32.gmra.mrb[0].mxu0 %v1208
    %v1445 = vpop.f32.mrb[0].mxu0
    %v1446 = vadd.f32 0.0, %v1445
    %v1447 = vpop.f32.mrb[0].mxu0
    %v1448 = vadd.f32 0.0, %v1447
    %1449 = vmatprep.mubr.f32.mxu0 0.0
    %1450 = vmatmul.mubr.f32.gmra.mrb[0].mxu0 %v1211
    %v1451 = vpop.f32.mrb[0].mxu0
    %v1452 = vadd.f32 0.0, %v1451
    %v1453 = vpop.f32.mrb[0].mxu0
    %v1454 = vadd.f32 0.0, %v1453
    %1455 = vmatprep.mubr.f32.mxu0 0.0
    %1456 = vmatmul.mubr.f32.gmra.mrb[0].mxu0 %v1214
    %v1457 = vpop.f32.mrb[0].mxu0
    %v1458 = vadd.f32 0.0, %v1457
    %v1459 = vpop.f32.mrb[0].mxu0
    %v1460 = vadd.f32 0.0, %v1459
    %1461 = vmatprep.mubr.f32.mxu0 0.0
    %1462 = vmatmul.mubr.f32.gmra.mrb[0].mxu0 %v1217
    %v1463 = vpop.f32.mrb[0].mxu0
    %v1464 = vadd.f32 0.0, %v1463
    %v1465 = vpop.f32.mrb[0].mxu0
    %v1466 = vadd.f32 0.0, %v1465
    %1467 = vmatprep.mubr.f32.mxu0 0.0
    %1468 = vmatmul.mubr.f32.gmra.mrb[0].mxu0 %v1220
    %v1469 = vpop.f32.mrb[0].mxu0
    %v1470 = vadd.f32 0.0, %v1469
    %v1471 = vpop.f32.mrb[0].mxu0
    %v1472 = vadd.f32 0.0, %v1471
    %1473 = vmatprep.mubr.f32.mxu0 0.0
    %1474 = vmatmul.mubr.f32.gmra.mrb[0].mxu0 %v1223
    %v1475 = vpop.f32.mrb[0].mxu0
    %v1476 = vadd.f32 0.0, %v1475
    %v1477 = vpop.f32.mrb[0].mxu0
    %v1478 = vadd.f32 0.0, %v1477
    %1479 = vmatprep.mubr.f32.mxu0 0.0
    %1480 = vmatmul.mubr.f32.gmra.mrb[0].mxu0 %v1226
    %v1481 = vpop.f32.mrb[0].mxu0
    %v1482 = vadd.f32 0.0, %v1481
    %v1483 = vpop.f32.mrb[0].mxu0
    %v1484 = vadd.f32 0.0, %v1483
    %1485 = vmatprep.mubr.f32.mxu0 0.0
    %1486 = vmatmul.mubr.f32.gmra.mrb[0].mxu0 %v1229
    %v1487 = vpop.f32.mrb[0].mxu0
    %v1488 = vadd.f32 0.0, %v1487
    %v1489 = vpop.f32.mrb[0].mxu0
    %v1490 = vadd.f32 0.0, %v1489
    %1491 = vdwg.mxu0
    %v1492 = vmax.f32 %v1302, %v1314
    %v1493 = vmax.f32 %v1308, %v1320
    %v1494 = vmax.f32 %v1492, %v1326
    %v1495 = vmax.f32 %v1493, %v1332
    %v1496 = vmax.f32 %v1494, %v1338
    %v1497 = vmax.f32 %v1495, %v1344
    %v1498 = vmax.f32 %v1496, %v1350
    %v1499 = vmax.f32 %v1497, %v1356
    %v1500 = vmax.f32 %v1498, %v1362
    %v1501 = vmax.f32 %v1499, %v1368
    %v1502 = vmax.f32 %v1500, %v1374
    %v1503 = vmax.f32 %v1501, %v1380
    %v1504 = vmax.f32 %v1502, %v1386
    %v1505 = vmax.f32 %v1503, %v1392
    %v1506 = vmax.f32 %v1504, %v1398
    %v1507 = vmax.f32 %v1505, %v1404
    %v1508 = vmax.f32 %v1506, %v1410
    %v1509 = vmax.f32 %v1507, %v1416
    %v1510 = vmax.f32 %v1508, %v1422
    %v1511 = vmax.f32 %v1509, %v1428
    %v1512 = vmax.f32 %v1510, %v1434
    %v1513 = vmax.f32 %v1511, %v1440
    %v1514 = vmax.f32 %v1512, %v1446
    %v1515 = vmax.f32 %v1513, %v1452
    %v1516 = vmax.f32 %v1514, %v1458
    %v1517 = vmax.f32 %v1515, %v1464
    %v1518 = vmax.f32 %v1516, %v1470
    %v1519 = vmax.f32 %v1517, %v1476
    %v1520 = vmax.f32 %v1518, %v1482
    %v1521 = vmax.f32 %v1519, %v1488
    %v1522 = vmax.f32 %v1520, %v1521
    %v1523 = vrot.slane %v1522, 4
    %v1524 = vmax.f32 %v1522, %v1523
    %v1525 = vrot.slane %v1524, 2
    %v1526 = vmax.f32 %v1524, %v1525
    %v1527 = vrot.slane %v1526, 1
    %v1528 = vmax.f32 %v1526, %v1527
    %v1529 = vmax.f32 %v1304, %v1316
    %v1530 = vmax.f32 %v1310, %v1322
    %v1531 = vmax.f32 %v1529, %v1328
    %v1532 = vmax.f32 %v1530, %v1334
    %v1533 = vmax.f32 %v1531, %v1340
    %v1534 = vmax.f32 %v1532, %v1346
    %v1535 = vmax.f32 %v1533, %v1352
    %v1536 = vmax.f32 %v1534, %v1358
    %v1537 = vmax.f32 %v1535, %v1364
    %v1538 = vmax.f32 %v1536, %v1370
    %v1539 = vmax.f32 %v1537, %v1376
    %v1540 = vmax.f32 %v1538, %v1382
    %v1541 = vmax.f32 %v1539, %v1388
    %v1542 = vmax.f32 %v1540, %v1394
    %v1543 = vmax.f32 %v1541, %v1400
    %v1544 = vmax.f32 %v1542, %v1406
    %v1545 = vmax.f32 %v1543, %v1412
    %v1546 = vmax.f32 %v1544, %v1418
    %v1547 = vmax.f32 %v1545, %v1424
    %v1548 = vmax.f32 %v1546, %v1430
    %v1549 = vmax.f32 %v1547, %v1436
    %v1550 = vmax.f32 %v1548, %v1442
    %v1551 = vmax.f32 %v1549, %v1448
    %v1552 = vmax.f32 %v1550, %v1454
    %v1553 = vmax.f32 %v1551, %v1460
    %v1554 = vmax.f32 %v1552, %v1466
    %v1555 = vmax.f32 %v1553, %v1472
    %v1556 = vmax.f32 %v1554, %v1478
    %v1557 = vmax.f32 %v1555, %v1484
    %v1558 = vmax.f32 %v1556, %v1490
    %v1559 = vmax.f32 %v1557, %v1558
    %v1560 = vrot.slane %v1559, 4
    %v1561 = vmax.f32 %v1559, %v1560
    %v1562 = vrot.slane %v1561, 2
    %v1563 = vmax.f32 %v1561, %v1562
    %v1564 = vrot.slane %v1563, 1
    %v1565 = vmax.f32 %v1563, %v1564
    %v1566 = vsub.f32 %v1302, %v1528
    %v1567 = vsub.f32 %v1304, %v1565
    %v1568 = vsub.f32 %v1308, %v1528
    %v1569 = vsub.f32 %v1310, %v1565
    %v1570 = vsub.f32 %v1314, %v1528
    %v1571 = vsub.f32 %v1316, %v1565
    %v1572 = vsub.f32 %v1320, %v1528
    %v1573 = vsub.f32 %v1322, %v1565
    %v1574 = vsub.f32 %v1326, %v1528
    %v1575 = vsub.f32 %v1328, %v1565
    %v1576 = vsub.f32 %v1332, %v1528
    %v1577 = vsub.f32 %v1334, %v1565
    %v1578 = vsub.f32 %v1338, %v1528
    %v1579 = vsub.f32 %v1340, %v1565
    %v1580 = vsub.f32 %v1344, %v1528
    %v1581 = vsub.f32 %v1346, %v1565
    %v1582 = vsub.f32 %v1350, %v1528
    %v1583 = vsub.f32 %v1352, %v1565
    %v1584 = vsub.f32 %v1356, %v1528
    %v1585 = vsub.f32 %v1358, %v1565
    %v1586 = vsub.f32 %v1362, %v1528
    %v1587 = vsub.f32 %v1364, %v1565
    %v1588 = vsub.f32 %v1368, %v1528
    %v1589 = vsub.f32 %v1370, %v1565
    %v1590 = vsub.f32 %v1374, %v1528
    %v1591 = vsub.f32 %v1376, %v1565
    %v1592 = vsub.f32 %v1380, %v1528
    %v1593 = vsub.f32 %v1382, %v1565
    %v1594 = vsub.f32 %v1386, %v1528
    %v1595 = vsub.f32 %v1388, %v1565
    %v1596 = vsub.f32 %v1392, %v1528
    %v1597 = vsub.f32 %v1394, %v1565
    %v1598 = vsub.f32 %v1398, %v1528
    %v1599 = vsub.f32 %v1400, %v1565
    %v1600 = vsub.f32 %v1404, %v1528
    %v1601 = vsub.f32 %v1406, %v1565
    %v1602 = vsub.f32 %v1410, %v1528
    %v1603 = vsub.f32 %v1412, %v1565
    %v1604 = vsub.f32 %v1416, %v1528
    %v1605 = vsub.f32 %v1418, %v1565
    %v1606 = vsub.f32 %v1422, %v1528
    %v1607 = vsub.f32 %v1424, %v1565
    %v1608 = vsub.f32 %v1428, %v1528
    %v1609 = vsub.f32 %v1430, %v1565
    %v1610 = vsub.f32 %v1434, %v1528
    %v1611 = vsub.f32 %v1436, %v1565
    %v1612 = vsub.f32 %v1440, %v1528
    %v1613 = vsub.f32 %v1442, %v1565
    %v1614 = vsub.f32 %v1446, %v1528
    %v1615 = vsub.f32 %v1448, %v1565
    %v1616 = vsub.f32 %v1452, %v1528
    %v1617 = vsub.f32 %v1454, %v1565
    %v1618 = vsub.f32 %v1458, %v1528
    %v1619 = vsub.f32 %v1460, %v1565
    %v1620 = vsub.f32 %v1464, %v1528
    %v1621 = vsub.f32 %v1466, %v1565
    %v1622 = vsub.f32 %v1470, %v1528
    %v1623 = vsub.f32 %v1472, %v1565
    %v1624 = vsub.f32 %v1476, %v1528
    %v1625 = vsub.f32 %v1478, %v1565
    %v1626 = vsub.f32 %v1482, %v1528
    %v1627 = vsub.f32 %v1484, %v1565
    %v1628 = vsub.f32 %v1488, %v1528
    %v1629 = vsub.f32 %v1490, %v1565
    %v1630 = vmul.f32 %v1566, 1.442695
    %v1631 = vpow.pop %v1630
    %v1632 = vmul.f32 %v1567, 1.442695
    %v1633 = vpow.pop %v1632
    %v1634 = vmul.f32 %v1568, 1.442695
    %v1635 = vpow.pop %v1634
    %v1636 = vmul.f32 %v1569, 1.442695
    %v1637 = vpow.pop %v1636
    %v1638 = vmul.f32 %v1570, 1.442695
    %v1639 = vpow.pop %v1638
    %v1640 = vmul.f32 %v1571, 1.442695
    %v1641 = vpow.pop %v1640
    %v1642 = vmul.f32 %v1572, 1.442695
    %v1643 = vpow.pop %v1642
    %v1644 = vmul.f32 %v1573, 1.442695
    %v1645 = vpow.pop %v1644
    %v1646 = vmul.f32 %v1574, 1.442695
    %v1647 = vpow.pop %v1646
    %v1648 = vmul.f32 %v1575, 1.442695
    %v1649 = vpow.pop %v1648
    %v1650 = vmul.f32 %v1576, 1.442695
    %v1651 = vpow.pop %v1650
    %v1652 = vmul.f32 %v1577, 1.442695
    %v1653 = vpow.pop %v1652
    %v1654 = vmul.f32 %v1578, 1.442695
    %v1655 = vpow.pop %v1654
    %v1656 = vmul.f32 %v1579, 1.442695
    %v1657 = vpow.pop %v1656
    %v1658 = vmul.f32 %v1580, 1.442695
    %v1659 = vpow.pop %v1658
    %v1660 = vmul.f32 %v1581, 1.442695
    %v1661 = vpow.pop %v1660
    %v1662 = vmul.f32 %v1582, 1.442695
    %v1663 = vpow.pop %v1662
    %v1664 = vmul.f32 %v1583, 1.442695
    %v1665 = vpow.pop %v1664
    %v1666 = vmul.f32 %v1584, 1.442695
    %v1667 = vpow.pop %v1666
    %v1668 = vmul.f32 %v1585, 1.442695
    %v1669 = vpow.pop %v1668
    %v1670 = vmul.f32 %v1586, 1.442695
    %v1671 = vpow.pop %v1670
    %v1672 = vmul.f32 %v1587, 1.442695
    %v1673 = vpow.pop %v1672
    %v1674 = vmul.f32 %v1588, 1.442695
    %v1675 = vpow.pop %v1674
    %v1676 = vmul.f32 %v1589, 1.442695
    %v1677 = vpow.pop %v1676
    %v1678 = vmul.f32 %v1590, 1.442695
    %v1679 = vpow.pop %v1678
    %v1680 = vmul.f32 %v1591, 1.442695
    %v1681 = vpow.pop %v1680
    %v1682 = vmul.f32 %v1592, 1.442695
    %v1683 = vpow.pop %v1682
    %v1684 = vmul.f32 %v1593, 1.442695
    %v1685 = vpow.pop %v1684
    %v1686 = vmul.f32 %v1594, 1.442695
    %v1687 = vpow.pop %v1686
    %v1688 = vmul.f32 %v1595, 1.442695
    %v1689 = vpow.pop %v1688
    %v1690 = vmul.f32 %v1596, 1.442695
    %v1691 = vpow.pop %v1690
    %v1692 = vmul.f32 %v1597, 1.442695
    %v1693 = vpow.pop %v1692
    %v1694 = vmul.f32 %v1598, 1.442695
    %v1695 = vpow.pop %v1694
    %v1696 = vmul.f32 %v1599, 1.442695
    %v1697 = vpow.pop %v1696
    %v1698 = vmul.f32 %v1600, 1.442695
    %v1699 = vpow.pop %v1698
    %v1700 = vmul.f32 %v1601, 1.442695
    %v1701 = vpow.pop %v1700
    %v1702 = vmul.f32 %v1602, 1.442695
    %v1703 = vpow.pop %v1702
    %v1704 = vmul.f32 %v1603, 1.442695
    %v1705 = vpow.pop %v1704
    %v1706 = vmul.f32 %v1604, 1.442695
    %v1707 = vpow.pop %v1706
    %v1708 = vmul.f32 %v1605, 1.442695
    %v1709 = vpow.pop %v1708
    %v1710 = vmul.f32 %v1606, 1.442695
    %v1711 = vpow.pop %v1710
    %v1712 = vmul.f32 %v1607, 1.442695
    %v1713 = vpow.pop %v1712
    %v1714 = vmul.f32 %v1608, 1.442695
    %v1715 = vpow.pop %v1714
    %v1716 = vmul.f32 %v1609, 1.442695
    %v1717 = vpow.pop %v1716
    %v1718 = vmul.f32 %v1610, 1.442695
    %v1719 = vpow.pop %v1718
    %v1720 = vmul.f32 %v1611, 1.442695
    %v1721 = vpow.pop %v1720
    %v1722 = vmul.f32 %v1612, 1.442695
    %v1723 = vpow.pop %v1722
    %v1724 = vmul.f32 %v1613, 1.442695
    %v1725 = vpow.pop %v1724
    %v1726 = vmul.f32 %v1614, 1.442695
    %v1727 = vpow.pop %v1726
    %v1728 = vmul.f32 %v1615, 1.442695
    %v1729 = vpow.pop %v1728
    %v1730 = vmul.f32 %v1616, 1.442695
    %v1731 = vpow.pop %v1730
    %v1732 = vmul.f32 %v1617, 1.442695
    %v1733 = vpow.pop %v1732
    %v1734 = vmul.f32 %v1618, 1.442695
    %v1735 = vpow.pop %v1734
    %v1736 = vmul.f32 %v1619, 1.442695
    %v1737 = vpow.pop %v1736
    %v1738 = vmul.f32 %v1620, 1.442695
    %v1739 = vpow.pop %v1738
    %v1740 = vmul.f32 %v1621, 1.442695
    %v1741 = vpow.pop %v1740
    %v1742 = vmul.f32 %v1622, 1.442695
    %v1743 = vpow.pop %v1742
    %v1744 = vmul.f32 %v1623, 1.442695
    %v1745 = vpow.pop %v1744
    %v1746 = vmul.f32 %v1624, 1.442695
    %v1747 = vpow.pop %v1746
    %v1748 = vmul.f32 %v1625, 1.442695
    %v1749 = vpow.pop %v1748
    %v1750 = vmul.f32 %v1626, 1.442695
    %v1751 = vpow.pop %v1750
    %v1752 = vmul.f32 %v1627, 1.442695
    %v1753 = vpow.pop %v1752
    %v1754 = vmul.f32 %v1628, 1.442695
    %v1755 = vpow.pop %v1754
    %v1756 = vmul.f32 %v1629, 1.442695
    %v1757 = vpow.pop %v1756
    %v1758 = vadd.f32 %v1631, %v1635
    %v1759 = vadd.f32 %v1758, %v1639
    %v1760 = vadd.f32 %v1759, %v1643
    %v1761 = vadd.f32 %v1760, %v1647
    %v1762 = vadd.f32 %v1761, %v1651
    %v1763 = vadd.f32 %v1762, %v1655
    %v1764 = vadd.f32 %v1763, %v1659
    %v1765 = vadd.f32 %v1764, %v1663
    %v1766 = vadd.f32 %v1765, %v1667
    %v1767 = vadd.f32 %v1766, %v1671
    %v1768 = vadd.f32 %v1767, %v1675
    %v1769 = vadd.f32 %v1768, %v1679
    %v1770 = vadd.f32 %v1769, %v1683
    %v1771 = vadd.f32 %v1770, %v1687
    %v1772 = vadd.f32 %v1771, %v1691
    %v1773 = vadd.f32 %v1772, %v1695
    %v1774 = vadd.f32 %v1773, %v1699
    %v1775 = vadd.f32 %v1774, %v1703
    %v1776 = vadd.f32 %v1775, %v1707
    %v1777 = vadd.f32 %v1776, %v1711
    %v1778 = vadd.f32 %v1777, %v1715
    %v1779 = vadd.f32 %v1778, %v1719
    %v1780 = vadd.f32 %v1779, %v1723
    %v1781 = vadd.f32 %v1780, %v1727
    %v1782 = vadd.f32 %v1781, %v1731
    %v1783 = vadd.f32 %v1782, %v1735
    %v1784 = vadd.f32 %v1783, %v1739
    %v1785 = vadd.f32 %v1784, %v1743
    %v1786 = vadd.f32 %v1785, %v1747
    %v1787 = vadd.f32 %v1786, %v1751
    %v1788 = vadd.f32 %v1787, %v1755
    %v1789 = vrot.slane %v1788, 4
    %v1790 = vadd.f32 %v1788, %v1789
    %v1791 = vrot.slane %v1790, 2
    %v1792 = vadd.f32 %v1790, %v1791
    %v1793 = vrot.slane %v1792, 1
    %v1794 = vadd.f32 %v1792, %v1793
    %v1795 = vadd.f32 %v1633, %v1637
    %v1796 = vadd.f32 %v1795, %v1641
    %v1797 = vadd.f32 %v1796, %v1645
    %v1798 = vadd.f32 %v1797, %v1649
    %v1799 = vadd.f32 %v1798, %v1653
    %v1800 = vadd.f32 %v1799, %v1657
    %v1801 = vadd.f32 %v1800, %v1661
    %v1802 = vadd.f32 %v1801, %v1665
    %v1803 = vadd.f32 %v1802, %v1669
    %v1804 = vadd.f32 %v1803, %v1673
    %v1805 = vadd.f32 %v1804, %v1677
    %v1806 = vadd.f32 %v1805, %v1681
    %v1807 = vadd.f32 %v1806, %v1685
    %v1808 = vadd.f32 %v1807, %v1689
    %v1809 = vadd.f32 %v1808, %v1693
    %v1810 = vadd.f32 %v1809, %v1697
    %v1811 = vadd.f32 %v1810, %v1701
    %v1812 = vadd.f32 %v1811, %v1705
    %v1813 = vadd.f32 %v1812, %v1709
    %v1814 = vadd.f32 %v1813, %v1713
    %v1815 = vadd.f32 %v1814, %v1717
    %v1816 = vadd.f32 %v1815, %v1721
    %v1817 = vadd.f32 %v1816, %v1725
    %v1818 = vadd.f32 %v1817, %v1729
    %v1819 = vadd.f32 %v1818, %v1733
    %v1820 = vadd.f32 %v1819, %v1737
    %v1821 = vadd.f32 %v1820, %v1741
    %v1822 = vadd.f32 %v1821, %v1745
    %v1823 = vadd.f32 %v1822, %v1749
    %v1824 = vadd.f32 %v1823, %v1753
    %v1825 = vadd.f32 %v1824, %v1757
    %v1826 = vrot.slane %v1825, 4
    %v1827 = vadd.f32 %v1825, %v1826
    %v1828 = vrot.slane %v1827, 2
    %v1829 = vadd.f32 %v1827, %v1828
    %v1830 = vrot.slane %v1829, 1
    %v1831 = vadd.f32 %v1829, %v1830
    %v1832 = vlog2.pop %v1794
    %v1833 = vmul.f32 %v1832, 0.6931472
    %v1834 = vlog2.pop %v1831
    %v1835 = vmul.f32 %v1834, 0.6931472
    %v1836 = vadd.f32 %v1528, %v1833
    %v1837 = vadd.f32 %v1565, %v1835
    %v1838 = vsub.f32 %v1836, %v1058
    %v1839 = vsub.f32 %v1837, %v1065
    %v1842 = vcombine.low %v1838, %v1839
    %v1844 = vunpack.c.l.s4 1966171168
    %v1845 = vunpack.c.0.s8 %v1844
    %v1846 = vlaneseq
    %v1847 = vshrl.u32 %v1846, 7
    %v1848 = vsub.s32 %v1845, %v1847
    %v1849 = vrot.slane %v1842, %v1848
    %v1851 = vunpack.c.l.s4 1966171168
    %v1852 = vunpack.c.0.s8 %v1851
    %v1853 = vlaneseq
    %v1854 = vshrl.u32 %v1853, 7
    %v1855 = vsub.s32 %v1852, %v1854
    %v1856 = vrot.slane %v1849, %v1855
    %s1858 = scalar_lea.vmem [#allocation8], 2
    %1859 = vst.msk [vmem:[%s1858] sm:$0x3] %vm957, %v1856
    // Predicated region
    $region26: #{tpu_custom_call.1} parent=1 // pred_check
      _
    $region27: #{tpu_custom_call.1} parent=1 // pred_check_branch
      %1861 = sbr.rel (0) target = $region29
    $region28: #{tpu_custom_call.1} parent=1 // pred_region
      %s1863 = ssub.s32 64, 64
      %1864 = vsyncadd [#allocation4], %s1863
      %s1865 = sshll.u32 [#allocation8], 4
      %s1866 = int_to_ptr.vmem [resolvable:$true] %s1865
      %1871 = dma.vmem_to_hbm [thread:$0]  %s1866, 64, %s3, [#allocation4], 32, 32, 2
    $region29: #{tpu_custom_call.1} parent=1 // pred_fallthru
      _
    // Predicated region
    $region30: #{tpu_custom_call.1} parent=1 // pred_check
      _
    $region31: #{tpu_custom_call.1} parent=1 // pred_check_branch
      %1873 = sbr.rel (0) target = $region33
    $region32: #{tpu_custom_call.1} parent=1 // pred_region
      %1874 = dma.done [#allocation4], 64
    $region33: #{tpu_custom_call.1} parent=1 // pred_fallthru
      _
    %1875 = vsyncpa [#allocation3], 1
    %1876 = vsyncpa [#allocation6], 1
    %1877 = vsyncpa [#allocation4], 1

</llo_original>
